<compile_context>
chip_gen: v5e
topology: v5e:2x2
jax: 0.10.0
libtpu: 0.0.40
codegen_flags: <defaults>
</compile_context>

<pallas_src>
import functools
import math

import jax
import jax.numpy as jnp
from jax import lax
from jax.experimental import pallas as pl
from jax.experimental.pallas import tpu as pltpu

_MIB = 1024 * 1024


def _cdiv(a, b):
    return (a + b - 1) // b


def _clamp_vmem(estimate_bytes):
    # Leave headroom under v7x's 64 MiB physical VMEM; raise above v5e's
    # 16 MiB scoped default when the working set needs it.
    return int(min(max(2 * estimate_bytes, 32 * _MIB), 56 * _MIB))


# --------------------------- Kernel 1: tiled linear ------------------------- #

def _linear_kernel(x_ref, w_ref, b_ref, o_ref):
    # bf16 operands, f32 accumulation (native MXU path).
    acc = jnp.dot(x_ref[...].astype(jnp.bfloat16),
                  w_ref[...].astype(jnp.bfloat16),
                  preferred_element_type=jnp.float32)
    o_ref[...] = (acc + b_ref[...]).astype(o_ref.dtype)


def _linear(x2d, w, b, *, tile_n=512, tile_d=1024):
    """(N, Din) @ (Din, Dout) + (Dout,) -> (N, Dout), tiled over rows/cols."""
    N, Din = x2d.shape
    Dout = w.shape[1]

    # Row tile: keep the double-buffered x tile around <= 4 MiB.
    row_cap = max(8, ((4 * _MIB) // (8 * Din)) // 8 * 8)
    tn = min(N, tile_n, row_cap)
    # Column tile: bound the streamed weight block (multiple of 128 when < Dout).
    td = Dout if Dout <= tile_d else tile_d
    while Din * td * 8 > 16 * _MIB and td > 256 and td % 256 == 0:
        td //= 2
    # v7x megacore: make sure the parallel grid has >= 2 iterations.
    if _cdiv(N, tn) * _cdiv(Dout, td) < 2 and N > 8:
        tn = max(8, ((tn // 2) // 8) * 8)
    if tn < N:
        tn = max(8, (tn // 8) * 8)

    n_row, n_col = _cdiv(N, tn), _cdiv(Dout, td)
    grid = (n_row, n_col)

    w_stream = n_row if n_col > 1 else 1
    cost = pl.CostEstimate(
        flops=2 * N * Din * Dout,
        transcendentals=0,
        bytes_accessed=4 * (N * Din + w_stream * Din * Dout + Dout + N * Dout))

    vmem_est = 4 * 2 * (tn * Din + Din * td + td + tn * td)

    return pl.pallas_call(
        _linear_kernel,
        out_shape=jax.ShapeDtypeStruct((N, Dout), x2d.dtype),
        grid=grid,
        in_specs=[
            pl.BlockSpec((tn, Din), lambda i, j: (i, 0)),    # row tile
            pl.BlockSpec((Din, td), lambda i, j: (0, j)),    # weight col tile
            pl.BlockSpec((1, td), lambda i, j: (0, j)),      # bias col tile
        ],
        out_specs=pl.BlockSpec((tn, td), lambda i, j: (i, j)),
        compiler_params=pltpu.CompilerParams(
            dimension_semantics=("parallel", "parallel"),
            vmem_limit_bytes=_clamp_vmem(vmem_est)),
        cost_estimate=cost,
    )(x2d, w, b.reshape(1, Dout))


# ---------------- Kernel 2: fused attention + output projection ------------- #

def _attn_kernel(q_ref, k_ref, v_ref, wo_ref, bo_ref, o_ref,
                 m_ref, l_ref, acc_ref, oacc_ref, *, seq_k, tile_s):
    h = pl.program_id(2)
    kv = pl.program_id(3)
    n_heads = pl.num_programs(2)
    n_kv = pl.num_programs(3)

    @pl.when(jnp.logical_and(h == 0, kv == 0))
    def _init_out():
        oacc_ref[...] = jnp.zeros_like(oacc_ref)

    @pl.when(kv == 0)
    def _init_head():
        m_ref[...] = jnp.full_like(m_ref, -jnp.inf)
        l_ref[...] = jnp.zeros_like(l_ref)
        acc_ref[...] = jnp.zeros_like(acc_ref)

    # 1/sqrt(d_keys) is folded into wq/bq in the wrapper.
    q = q_ref[0, 0].astype(jnp.bfloat16)          # (TL, Dk)
    k = k_ref[0, 0].astype(jnp.bfloat16)          # (TS, Dk)
    v = v_ref[0, 0]                               # (TS, Dv) f32

    # QK^T: contract last dims directly (no transpose), bf16 in / f32 acc.
    s = lax.dot_general(q, k, (((1,), (1,)), ((), ())),
                        preferred_element_type=jnp.float32)   # (TL, TS)

    if seq_k % tile_s != 0:                       # static ragged-KV guard
        col_ids = kv * tile_s + lax.broadcasted_iota(jnp.int32, (1, tile_s), 1)
        s = s + jnp.where(col_ids < seq_k, 0.0, -jnp.inf).astype(jnp.float32)
        row_ids = kv * tile_s + lax.broadcasted_iota(jnp.int32, (tile_s, 1), 0)
        v = jnp.where(row_ids < seq_k, v, jnp.float32(0))
    # TODO(synk): attn_mask would be applied here as an additional additive bias.

    m_prev = m_ref[...]
    m_new = jnp.maximum(m_prev, jnp.max(s, axis=-1, keepdims=True))
    alpha = jnp.exp(m_prev - m_new)
    p = jnp.exp(s - m_new)
    l_ref[...] = alpha * l_ref[...] + jnp.sum(p, axis=-1, keepdims=True)
    acc_ref[...] = alpha * acc_ref[...] + jnp.dot(
        p.astype(jnp.bfloat16), v.astype(jnp.bfloat16),
        preferred_element_type=jnp.float32)
    m_ref[...] = m_new

    @pl.when(kv == n_kv - 1)
    def _project_head():
        # Per-head output projection accumulated into a resident f32 slab —
        # no concatenate, no HBM round trip of the context.
        ctx = acc_ref[...] * pl.reciprocal(l_ref[...], approx=True)   # (TL, Dv)
        oacc_ref[...] += jnp.dot(ctx.astype(jnp.bfloat16),
                                 wo_ref[0].astype(jnp.bfloat16),
                                 preferred_element_type=jnp.float32)

    @pl.when(jnp.logical_and(h == n_heads - 1, kv == n_kv - 1))
    def _finalize():
        o_ref[0] = (oacc_ref[...] + bo_ref[...]).astype(o_ref.dtype)


def _attention_with_out_proj(q, k, v, wo, bo, *, tile_l_max=512, tile_s_max=256):
    """q: (B,H,L,Dk), k: (B,H,S,Dk), v: (B,H,S,Dv), wo: (H,Dv,Dm) -> (B,L,Dm)."""
    B, H, L, d_keys = q.shape
    S = k.shape[2]
    d_values = v.shape[3]
    d_model = wo.shape[2]

    # Query tile: favor a large TL (K/V HBM traffic scales with L/TL), but keep
    # the (TL, d_model) output block / accumulator modest.
    tl = L if L <= tile_l_max else tile_l_max
    row_cap = max(64, ((4 * _MIB) // (4 * d_model)) // 8 * 8)
    if tl > row_cap:
        tl = row_cap
    # v7x megacore: ensure the parallel (B, L-tile) axes give both cores work.
    while B * _cdiv(L, tl) < 2 and tl >= 16:
        tl = max(8, ((tl // 2 + 7) // 8) * 8)
    ts = S if S <= tile_s_max else tile_s_max

    grid = (B, _cdiv(L, tl), H, _cdiv(S, ts))
    l_tiles = _cdiv(L, tl)

    kernel = functools.partial(_attn_kernel, seq_k=S, tile_s=ts)

    cost = pl.CostEstimate(
        flops=2 * B * H * L * S * (d_keys + d_values)
        + 2 * B * L * H * d_values * d_model,
        transcendentals=B * H * L * S,
        bytes_accessed=4 * (B * H * L * d_keys                          # Q once
                            + l_tiles * B * H * S * (d_keys + d_values)  # K/V re-stream
                            + B * l_tiles * H * d_values * d_model       # wo per (b,i,h)
                            + d_model
                            + B * L * d_model))

    vmem_est = 4 * (2 * tl * d_keys + 2 * ts * d_keys + 2 * ts * d_values
                    + 2 * d_values * d_model + 2 * d_model + 2 * tl * d_model
                    + 2 * tl * 128 + tl * d_values + tl * d_model
                    + tl * ts)

    return pl.pallas_call(
        kernel,
        out_shape=jax.ShapeDtypeStruct((B, L, d_model), q.dtype),
        grid=grid,
        in_specs=[
            pl.BlockSpec((1, 1, tl, d_keys), lambda b, i, h, s: (b, h, i, 0)),
            pl.BlockSpec((1, 1, ts, d_keys), lambda b, i, h, s: (b, h, s, 0)),
            pl.BlockSpec((1, 1, ts, d_values), lambda b, i, h, s: (b, h, s, 0)),
            pl.BlockSpec((1, d_values, d_model), lambda b, i, h, s: (h, 0, 0)),
            pl.BlockSpec((1, d_model), lambda b, i, h, s: (0, 0)),
        ],
        out_specs=pl.BlockSpec((1, tl, d_model), lambda b, i, h, s: (b, i, 0)),
        scratch_shapes=[
            pltpu.VMEM((tl, 1), jnp.float32),           # running max
            pltpu.VMEM((tl, 1), jnp.float32),           # running denom
            pltpu.VMEM((tl, d_values), jnp.float32),    # per-head context acc
            pltpu.VMEM((tl, d_model), jnp.float32),     # output-projection acc
        ],
        compiler_params=pltpu.CompilerParams(
            dimension_semantics=("parallel", "parallel", "arbitrary", "arbitrary"),
            vmem_limit_bytes=_clamp_vmem(vmem_est)),
        cost_estimate=cost,
    )(q, k, v, wo, bo.reshape(1, d_model))


# ------------------------------ Module wrapper ------------------------------ #

def init_params(key, d_model, n_heads, d_keys=None, d_values=None,
                dtype=jnp.float32):
    d_keys = d_keys or d_model // n_heads
    d_values = d_values or d_model // n_heads
    ks = jax.random.split(key, 8)
    scale_in = 1.0 / jnp.sqrt(jnp.float32(d_model))
    scale_out = 1.0 / jnp.sqrt(jnp.float32(d_values * n_heads))

    def lin(kw, kb, din, dout, sc):
        w = (jax.random.uniform(kw, (din, dout), dtype) * 2.0 - 1.0) * sc
        b = (jax.random.uniform(kb, (dout,), dtype) * 2.0 - 1.0) * sc
        return w, b

    wq, bq = lin(ks[0], ks[1], d_model, d_keys * n_heads, scale_in)
    wk, bk = lin(ks[2], ks[3], d_model, d_keys * n_heads, scale_in)
    wv, bv = lin(ks[4], ks[5], d_model, d_values * n_heads, scale_in)
    wo, bo = lin(ks[6], ks[7], d_values * n_heads, d_model, scale_out)
    return dict(wq=wq, bq=bq, wk=wk, bk=bk, wv=wv, bv=bv, wo=wo, bo=bo)


def attention_layer(queries, keys, values, attn_mask, params, n_heads):
    # Identity-based dispatch (outside jit) so self/cross attention can fuse
    # the Q/K/V projections into fewer, wider matmul calls.
    same_qkv = (queries is keys) and (keys is values)
    same_kv = keys is values
    return _attention_layer(queries, keys, values, attn_mask, params,
                            n_heads=n_heads, same_qkv=same_qkv, same_kv=same_kv)


@functools.partial(jax.jit, static_argnames=("n_heads", "same_qkv", "same_kv"))
def _attention_layer(queries, keys, values, attn_mask, params, n_heads,
                     same_qkv, same_kv):
    # TODO(synk): attn_mask accepted but not applied (inner_attention opaque).
    del attn_mask
    B, L, d_model = queries.shape
    _, S, _ = keys.shape

    hdk = params["wq"].shape[1]
    hdv = params["wv"].shape[1]
    d_keys = hdk // n_heads
    d_values = hdv // n_heads

    # Fold 1/sqrt(d_keys) into the query projection (one-time weight scale).
    scale = 1.0 / math.sqrt(d_keys)
    wq = params["wq"] * scale
    bq = params["bq"] * scale

    xq = queries.reshape(B * L, d_model)
    xkv = keys.reshape(B * S, d_model)

    if same_qkv:
        w = jnp.concatenate([wq, params["wk"], params["wv"]], axis=1)
        bias = jnp.concatenate([bq, params["bk"], params["bv"]], axis=0)
        qkv = _linear(xq, w, bias)
        q, k, v = qkv[:, :hdk], qkv[:, hdk:2 * hdk], qkv[:, 2 * hdk:]
    elif same_kv:
        q = _linear(xq, wq, bq)
        w = jnp.concatenate([params["wk"], params["wv"]], axis=1)
        bias = jnp.concatenate([params["bk"], params["bv"]], axis=0)
        kv = _linear(xkv, w, bias)
        k, v = kv[:, :hdk], kv[:, hdk:]
    else:
        q = _linear(xq, wq, bq)
        k = _linear(xkv, params["wk"], params["bk"])
        v = _linear(values.reshape(B * S, d_model), params["wv"], params["bv"])

    # One HBM transpose pass into per-head layout so every attention block is
    # full-extent and lane-aligned (no per-head lane slicing inside the kernel).
    q = q.reshape(B, L, n_heads, d_keys).transpose(0, 2, 1, 3)
    k = k.reshape(B, S, n_heads, d_keys).transpose(0, 2, 1, 3)
    v = v.reshape(B, S, n_heads, d_values).transpose(0, 2, 1, 3)

    wo = params["wo"].reshape(n_heads, d_values, d_model)
    return _attention_with_out_proj(q, k, v, wo, params["bo"])


# -------------------------------- Reference --------------------------------- #

def _reference(queries, keys, values, params, n_heads):
    B, L, d_model = queries.shape
    _, S, _ = keys.shape
    H = n_heads
    q = queries @ params["wq"] + params["bq"]
    k = keys @ params["wk"] + params["bk"]
    v = values @ params["wv"] + params["bv"]
    dk = q.shape[-1] // H
    dv = v.shape[-1] // H
    q = q.reshape(B, L, H, dk)
    k = k.reshape(B, S, H, dk)
    v = v.reshape(B, S, H, dv)
    s = jnp.einsum("blhd,bshd->bhls", q, k) / jnp.sqrt(jnp.float32(dk))
    p = jax.nn.softmax(s, axis=-1)
    o = jnp.einsum("bhls,bshd->blhd", p, v).reshape(B, L, H * dv)
    return o @ params["wo"] + params["bo"]


# ---------------------------------- Main ------------------------------------ #

if __name__ == "__main__":
    key = jax.random.PRNGKey(0)
    k_q, k_k, k_v, k_p = jax.random.split(key, 4)

    B, L, S = 2, 8, 8
    d_model, n_heads = 32, 4

    queries = jax.random.normal(k_q, (B, L, d_model), jnp.float32)
    keys = jax.random.normal(k_k, (B, S, d_model), jnp.float32)
    values = jax.random.normal(k_v, (B, S, d_model), jnp.float32)
    params = init_params(k_p, d_model, n_heads)

    # Cross-attention path (separate projections).
    out = attention_layer(queries, keys, values, None, params, n_heads)
    jax.block_until_ready(out)
    ref = _reference(queries, keys, values, params, n_heads)
    assert out.shape == (B, L, d_model)
    # Tolerance relaxed for bf16 MXU operands (f32 accumulation) and the
    # approximate reciprocal in the softmax normalization.
    err = float(jnp.max(jnp.abs(out - ref)))
    assert jnp.allclose(out, ref, atol=2e-2, rtol=2e-2), err

    # Self-attention path (fused QKV projection).
    out2 = attention_layer(queries, queries, queries, None, params, n_heads)
    jax.block_until_ready(out2)
    ref2 = _reference(queries, queries, queries, params, n_heads)
    err2 = float(jnp.max(jnp.abs(out2 - ref2)))
    assert jnp.allclose(out2, ref2, atol=2e-2, rtol=2e-2), err2

    print("KERNEL_OK")
</pallas_src>

<mosaic_0001>
module attributes {stable_mosaic.version = 11 : i64} {
  func.func @_linear_kernel(%arg0: i32, %arg1: i32, %arg2: memref<8x32xf32, #tpu.memory_space<vmem>>, %arg3: memref<32x32xf32, #tpu.memory_space<vmem>>, %arg4: memref<1x32xf32, #tpu.memory_space<vmem>>, %arg5: memref<8x32xf32, #tpu.memory_space<vmem>>) attributes {dimension_semantics = [#tpu.dimension_semantics<parallel>, #tpu.dimension_semantics<parallel>], iteration_bounds = array<i64: 2, 1>, scalar_prefetch = 0 : i64, scratch_operands = 0 : i64, tpu.core_type = #tpu.core_type<tc>, window_params = [{transform_indices = @transform_0, window_bounds = array<i64: 8, 32>}, {transform_indices = @transform_1, window_bounds = array<i64: 32, 32>}, {transform_indices = @transform_2, window_bounds = array<i64: 1, 32>}, {transform_indices = @transform_3, window_bounds = array<i64: 8, 32>}]} {
    %c0 = arith.constant 0 : index
    %c0_0 = arith.constant 0 : index
    %0 = vector.load %arg2[%c0, %c0_0] : memref<8x32xf32, #tpu.memory_space<vmem>>, vector<8x32xf32>
    %1 = arith.truncf %0 : vector<8x32xf32> to vector<8x32xbf16>
    %c0_1 = arith.constant 0 : index
    %c0_2 = arith.constant 0 : index
    %2 = vector.load %arg3[%c0_1, %c0_2] : memref<32x32xf32, #tpu.memory_space<vmem>>, vector<32x32xf32>
    %3 = arith.truncf %2 : vector<32x32xf32> to vector<32x32xbf16>
    %cst = arith.constant dense<0.000000e+00> : vector<8x32xf32>
    %4 = tpu.matmul %1, %3, %cst {dimension_numbers = #tpu.dot_dimension_numbers<[1], [0], [0], [1], [0, 0, 1, 1], [], []>} : vector<8x32xbf16>, vector<32x32xbf16>, vector<8x32xf32> -> vector<8x32xf32>
    %c0_3 = arith.constant 0 : index
    %c0_4 = arith.constant 0 : index
    %5 = vector.load %arg4[%c0_3, %c0_4] : memref<1x32xf32, #tpu.memory_space<vmem>>, vector<1x32xf32>
    %6 = vector.broadcast %5 : vector<1x32xf32> to vector<8x32xf32>
    %7 = arith.addf %4, %6 : vector<8x32xf32>
    %c0_5 = arith.constant 0 : index
    %c0_6 = arith.constant 0 : index
    %8 = vector.load %arg5[%c0_5, %c0_6] : memref<8x32xf32, #tpu.memory_space<vmem>>, vector<8x32xf32>
    tpu.vector_store %arg5[%c0_5, %c0_6], %7 {strides = array<i32>} : memref<8x32xf32, #tpu.memory_space<vmem>>, vector<8x32xf32>,
    return
  }
  func.func @transform_0(%arg0: i32, %arg1: i32) -> (i32, i32) {
    %c0_i32 = arith.constant 0 : i32
    %c0_i32_0 = arith.constant 0 : i32
    return %arg0, %c0_i32 : i32, i32
  }
  func.func @transform_1(%arg0: i32, %arg1: i32) -> (i32, i32) {
    %c0_i32 = arith.constant 0 : i32
    %c0_i32_0 = arith.constant 0 : i32
    return %c0_i32, %arg1 : i32, i32
  }
  func.func @transform_2(%arg0: i32, %arg1: i32) -> (i32, i32) {
    %c0_i32 = arith.constant 0 : i32
    %c0_i32_0 = arith.constant 0 : i32
    return %c0_i32, %arg1 : i32, i32
  }
  func.func @transform_3(%arg0: i32, %arg1: i32) -> (i32, i32) {
    %c0_i32 = arith.constant 0 : i32
    return %arg0, %arg1 : i32, i32
  }
}

module attributes {stable_mosaic.version = 11 : i64} {
  func.func @_linear_kernel(%arg0: i32, %arg1: i32, %arg2: memref<8x32xf32, #tpu.memory_space<vmem>>, %arg3: memref<32x32xf32, #tpu.memory_space<vmem>>, %arg4: memref<1x32xf32, #tpu.memory_space<vmem>>, %arg5: memref<8x32xf32, #tpu.memory_space<vmem>>) attributes {dimension_semantics = [#tpu.dimension_semantics<parallel>, #tpu.dimension_semantics<parallel>], iteration_bounds = array<i64: 2, 1>, scalar_prefetch = 0 : i64, scratch_operands = 0 : i64, tpu.core_type = #tpu.core_type<tc>, window_params = [{transform_indices = @transform_0, window_bounds = array<i64: 8, 32>}, {transform_indices = @transform_1, window_bounds = array<i64: 32, 32>}, {transform_indices = @transform_2, window_bounds = array<i64: 1, 32>}, {transform_indices = @transform_3, window_bounds = array<i64: 8, 32>}]} {
    %c0 = arith.constant 0 : index
    %c0_0 = arith.constant 0 : index
    %0 = vector.load %arg2[%c0, %c0_0] : memref<8x32xf32, #tpu.memory_space<vmem>>, vector<8x32xf32>
    %1 = arith.truncf %0 : vector<8x32xf32> to vector<8x32xbf16>
    %c0_1 = arith.constant 0 : index
    %c0_2 = arith.constant 0 : index
    %2 = vector.load %arg3[%c0_1, %c0_2] : memref<32x32xf32, #tpu.memory_space<vmem>>, vector<32x32xf32>
    %3 = arith.truncf %2 : vector<32x32xf32> to vector<32x32xbf16>
    %cst = arith.constant dense<0.000000e+00> : vector<8x32xf32>
    %4 = tpu.matmul %1, %3, %cst {dimension_numbers = #tpu.dot_dimension_numbers<[1], [0], [0], [1], [0, 0, 1, 1], [], []>} : vector<8x32xbf16>, vector<32x32xbf16>, vector<8x32xf32> -> vector<8x32xf32>
    %c0_3 = arith.constant 0 : index
    %c0_4 = arith.constant 0 : index
    %5 = vector.load %arg4[%c0_3, %c0_4] : memref<1x32xf32, #tpu.memory_space<vmem>>, vector<1x32xf32>
    %6 = vector.broadcast %5 : vector<1x32xf32> to vector<8x32xf32>
    %7 = arith.addf %4, %6 : vector<8x32xf32>
    %c0_5 = arith.constant 0 : index
    %c0_6 = arith.constant 0 : index
    %8 = vector.load %arg5[%c0_5, %c0_6] : memref<8x32xf32, #tpu.memory_space<vmem>>, vector<8x32xf32>
    tpu.vector_store %arg5[%c0_5, %c0_6], %7 {strides = array<i32>} : memref<8x32xf32, #tpu.memory_space<vmem>>, vector<8x32xf32>,
    return
  }
  func.func @transform_0(%arg0: i32, %arg1: i32) -> (i32, i32) {
    %c0_i32 = arith.constant 0 : i32
    %c0_i32_0 = arith.constant 0 : i32
    return %arg0, %c0_i32 : i32, i32
  }
  func.func @transform_1(%arg0: i32, %arg1: i32) -> (i32, i32) {
    %c0_i32 = arith.constant 0 : i32
    %c0_i32_0 = arith.constant 0 : i32
    return %c0_i32, %arg1 : i32, i32
  }
  func.func @transform_2(%arg0: i32, %arg1: i32) -> (i32, i32) {
    %c0_i32 = arith.constant 0 : i32
    %c0_i32_0 = arith.constant 0 : i32
    return %c0_i32, %arg1 : i32, i32
  }
  func.func @transform_3(%arg0: i32, %arg1: i32) -> (i32, i32) {
    %c0_i32 = arith.constant 0 : i32
    return %arg0, %arg1 : i32, i32
  }
}

module attributes {stable_mosaic.version = 11 : i64} {
  func.func @_linear_kernel(%arg0: i32, %arg1: i32, %arg2: memref<8x32xf32, #tpu.memory_space<vmem>>, %arg3: memref<32x32xf32, #tpu.memory_space<vmem>>, %arg4: memref<1x32xf32, #tpu.memory_space<vmem>>, %arg5: memref<8x32xf32, #tpu.memory_space<vmem>>) attributes {dimension_semantics = [#tpu.dimension_semantics<parallel>, #tpu.dimension_semantics<parallel>], iteration_bounds = array<i64: 2, 1>, scalar_prefetch = 0 : i64, scratch_operands = 0 : i64, tpu.core_type = #tpu.core_type<tc>, window_params = [{transform_indices = @transform_0, window_bounds = array<i64: 8, 32>}, {transform_indices = @transform_1, window_bounds = array<i64: 32, 32>}, {transform_indices = @transform_2, window_bounds = array<i64: 1, 32>}, {transform_indices = @transform_3, window_bounds = array<i64: 8, 32>}]} {
    %c0 = arith.constant 0 : index
    %c0_0 = arith.constant 0 : index
    %0 = vector.load %arg2[%c0, %c0_0] : memref<8x32xf32, #tpu.memory_space<vmem>>, vector<8x32xf32>
    %1 = arith.truncf %0 : vector<8x32xf32> to vector<8x32xbf16>
    %c0_1 = arith.constant 0 : index
    %c0_2 = arith.constant 0 : index
    %2 = vector.load %arg3[%c0_1, %c0_2] : memref<32x32xf32, #tpu.memory_space<vmem>>, vector<32x32xf32>
    %3 = arith.truncf %2 : vector<32x32xf32> to vector<32x32xbf16>
    %cst = arith.constant dense<0.000000e+00> : vector<8x32xf32>
    %4 = tpu.matmul %1, %3, %cst {dimension_numbers = #tpu.dot_dimension_numbers<[1], [0], [0], [1], [0, 0, 1, 1], [], []>} : vector<8x32xbf16>, vector<32x32xbf16>, vector<8x32xf32> -> vector<8x32xf32>
    %c0_3 = arith.constant 0 : index
    %c0_4 = arith.constant 0 : index
    %5 = vector.load %arg4[%c0_3, %c0_4] : memref<1x32xf32, #tpu.memory_space<vmem>>, vector<1x32xf32>
    %6 = vector.broadcast %5 : vector<1x32xf32> to vector<8x32xf32>
    %7 = arith.addf %4, %6 : vector<8x32xf32>
    %c0_5 = arith.constant 0 : index
    %c0_6 = arith.constant 0 : index
    %8 = vector.load %arg5[%c0_5, %c0_6] : memref<8x32xf32, #tpu.memory_space<vmem>>, vector<8x32xf32>
    tpu.vector_store %arg5[%c0_5, %c0_6], %7 {strides = array<i32>} : memref<8x32xf32, #tpu.memory_space<vmem>>, vector<8x32xf32>,
    return
  }
  func.func @transform_0(%arg0: i32, %arg1: i32) -> (i32, i32) {
    %c0_i32 = arith.constant 0 : i32
    %c0_i32_0 = arith.constant 0 : i32
    return %arg0, %c0_i32 : i32, i32
  }
  func.func @transform_1(%arg0: i32, %arg1: i32) -> (i32, i32) {
    %c0_i32 = arith.constant 0 : i32
    %c0_i32_0 = arith.constant 0 : i32
    return %c0_i32, %arg1 : i32, i32
  }
  func.func @transform_2(%arg0: i32, %arg1: i32) -> (i32, i32) {
    %c0_i32 = arith.constant 0 : i32
    %c0_i32_0 = arith.constant 0 : i32
    return %c0_i32, %arg1 : i32, i32
  }
  func.func @transform_3(%arg0: i32, %arg1: i32) -> (i32, i32) {
    %c0_i32 = arith.constant 0 : i32
    return %arg0, %arg1 : i32, i32
  }
}

module attributes {stable_mosaic.version = 11 : i64} {
  func.func @_attn_kernel(%arg0: i32, %arg1: i32, %arg2: i32, %arg3: i32, %arg4: memref<1x1x8x8xf32, #tpu.memory_space<vmem>>, %arg5: memref<1x1x8x8xf32, #tpu.memory_space<vmem>>, %arg6: memref<1x1x8x8xf32, #tpu.memory_space<vmem>>, %arg7: memref<1x8x32xf32, #tpu.memory_space<vmem>>, %arg8: memref<1x32xf32, #tpu.memory_space<vmem>>, %arg9: memref<1x8x32xf32, #tpu.memory_space<vmem>>, %arg10: memref<8x1xf32, #tpu.memory_space<vmem>>, %arg11: memref<8x1xf32, #tpu.memory_space<vmem>>, %arg12: memref<8x8xf32, #tpu.memory_space<vmem>>, %arg13: memref<8x32xf32, #tpu.memory_space<vmem>>) attributes {dimension_semantics = [#tpu.dimension_semantics<parallel>, #tpu.dimension_semantics<parallel>, #tpu.dimension_semantics<arbitrary>, #tpu.dimension_semantics<arbitrary>], iteration_bounds = array<i64: 2, 1, 4, 1>, scalar_prefetch = 0 : i64, scratch_operands = 4 : i64, tpu.core_type = #tpu.core_type<tc>, window_params = [{transform_indices = @transform_0, window_bounds = array<i64: 1, 1, 8, 8>}, {transform_indices = @transform_1, window_bounds = array<i64: 1, 1, 8, 8>}, {transform_indices = @transform_2, window_bounds = array<i64: 1, 1, 8, 8>}, {transform_indices = @transform_3, window_bounds = array<i64: 1, 8, 32>}, {pipeline_mode = #tpu.pipeline_mode<synchronous>, transform_indices = @transform_4, window_bounds = array<i64: 1, 32>}, {transform_indices = @transform_5, window_bounds = array<i64: 1, 8, 32>}]} {
    %c0_i32 = arith.constant 0 : i32
    %0 = arith.cmpi eq, %arg2, %c0_i32 : i32
    %c0_i32_0 = arith.constant 0 : i32
    %1 = arith.cmpi eq, %arg3, %c0_i32_0 : i32
    %2 = arith.andi %0, %1 : i1
    %3 = arith.extui %2 : i1 to i32
    %c0_i32_1 = arith.constant 0 : i32
    %4 = arith.cmpi ne, %3, %c0_i32_1 : i32
    scf.if %4 {
      %cst_34 = arith.constant 0.000000e+00 : f32
      %49 = vector.broadcast %cst_34 : f32 to vector<8x32xf32>
      %c0_35 = arith.constant 0 : index
      %c0_36 = arith.constant 0 : index
      %50 = vector.load %arg13[%c0_35, %c0_36] : memref<8x32xf32, #tpu.memory_space<vmem>>, vector<8x32xf32>
      tpu.vector_store %arg13[%c0_35, %c0_36], %49 {strides = array<i32>} : memref<8x32xf32, #tpu.memory_space<vmem>>, vector<8x32xf32>,
    } else {
    }
    %c0_i32_2 = arith.constant 0 : i32
    %5 = arith.cmpi eq, %arg3, %c0_i32_2 : i32
    %6 = arith.extui %5 : i1 to i32
    %c0_i32_3 = arith.constant 0 : i32
    %7 = arith.cmpi ne, %6, %c0_i32_3 : i32
    scf.if %7 {
      %cst_34 = arith.constant 0xFF800000 : f32
      %49 = vector.broadcast %cst_34 : f32 to vector<8x1xf32>
      %c0_35 = arith.constant 0 : index
      %c0_36 = arith.constant 0 : index
      %50 = vector.load %arg10[%c0_35, %c0_36] : memref<8x1xf32, #tpu.memory_space<vmem>>, vector<8x1xf32>
      tpu.vector_store %arg10[%c0_35, %c0_36], %49 {strides = array<i32>} : memref<8x1xf32, #tpu.memory_space<vmem>>, vector<8x1xf32>,
      %cst_37 = arith.constant 0.000000e+00 : f32
      %51 = vector.broadcast %cst_37 : f32 to vector<8x1xf32>
      %c0_38 = arith.constant 0 : index
      %c0_39 = arith.constant 0 : index
      %52 = vector.load %arg11[%c0_38, %c0_39] : memref<8x1xf32, #tpu.memory_space<vmem>>, vector<8x1xf32>
      tpu.vector_store %arg11[%c0_38, %c0_39], %51 {strides = array<i32>} : memref<8x1xf32, #tpu.memory_space<vmem>>, vector<8x1xf32>,
      %cst_40 = arith.constant 0.000000e+00 : f32
      %53 = vector.broadcast %cst_40 : f32 to vector<8x8xf32>
      %c0_41 = arith.constant 0 : index
      %c0_42 = arith.constant 0 : index
      %54 = vector.load %arg12[%c0_41, %c0_42] : memref<8x8xf32, #tpu.memory_space<vmem>>, vector<8x8xf32>
      tpu.vector_store %arg12[%c0_41, %c0_42], %53 {strides = array<i32>} : memref<8x8xf32, #tpu.memory_space<vmem>>, vector<8x8xf32>,
    } else {
    }
    %c0 = arith.constant 0 : index
    %c0_4 = arith.constant 0 : index
    %c0_5 = arith.constant 0 : index
    %c0_6 = arith.constant 0 : index
    %8 = vector.load %arg4[%c0, %c0_4, %c0_5, %c0_6] : memref<1x1x8x8xf32, #tpu.memory_space<vmem>>, vector<1x1x8x8xf32>
    %9 = vector.shape_cast %8 : vector<1x1x8x8xf32> to vector<8x8xf32>
    %10 = arith.truncf %9 : vector<8x8xf32> to vector<8x8xbf16>
    %c0_7 = arith.constant 0 : index
    %c0_8 = arith.constant 0 : index
    %c0_9 = arith.constant 0 : index
    %c0_10 = arith.constant 0 : index
    %11 = vector.load %arg5[%c0_7, %c0_8, %c0_9, %c0_10] : memref<1x1x8x8xf32, #tpu.memory_space<vmem>>, vector<1x1x8x8xf32>
    %12 = vector.shape_cast %11 : vector<1x1x8x8xf32> to vector<8x8xf32>
    %13 = arith.truncf %12 : vector<8x8xf32> to vector<8x8xbf16>
    %c0_11 = arith.constant 0 : index
    %c0_12 = arith.constant 0 : index
    %c0_13 = arith.constant 0 : index
    %c0_14 = arith.constant 0 : index
    %14 = vector.load %arg6[%c0_11, %c0_12, %c0_13, %c0_14] : memref<1x1x8x8xf32, #tpu.memory_space<vmem>>, vector<1x1x8x8xf32>
    %15 = vector.shape_cast %14 : vector<1x1x8x8xf32> to vector<8x8xf32>
    %cst = arith.constant dense<0.000000e+00> : vector<8x8xf32>
    %16 = tpu.matmul %10, %13, %cst {dimension_numbers = #tpu.dot_dimension_numbers<[1], [1], [0], [0], [0, 0, 1, 0], [], []>} : vector<8x8xbf16>, vector<8x8xbf16>, vector<8x8xf32> -> vector<8x8xf32>
    %c0_15 = arith.constant 0 : index
    %c0_16 = arith.constant 0 : index
    %17 = vector.load %arg10[%c0_15, %c0_16] : memref<8x1xf32, #tpu.memory_space<vmem>>, vector<8x1xf32>
    %cst_17 = arith.constant dense<0xFF800000> : vector<8xf32>
    %18 = vector.multi_reduction <maximumf>, %16, %cst_17 [1] : vector<8x8xf32> to vector<8xf32>
    %19 = vector.shape_cast %18 : vector<8xf32> to vector<8x1xf32>
    %20 = arith.maximumf %17, %19 : vector<8x1xf32>
    %21 = arith.subf %17, %20 : vector<8x1xf32>
    %22 = math.exp %21 : vector<8x1xf32>
    %23 = vector.broadcast %20 : vector<8x1xf32> to vector<8x8xf32>
    %24 = arith.subf %16, %23 : vector<8x8xf32>
    %25 = math.exp %24 : vector<8x8xf32>
    %c0_18 = arith.constant 0 : index
    %c0_19 = arith.constant 0 : index
    %26 = vector.load %arg11[%c0_18, %c0_19] : memref<8x1xf32, #tpu.memory_space<vmem>>, vector<8x1xf32>
    %27 = arith.mulf %22, %26 : vector<8x1xf32>
    %cst_20 = arith.constant dense<0.000000e+00> : vector<8xf32>
    %28 = vector.multi_reduction <add>, %25, %cst_20 [1] : vector<8x8xf32> to vector<8xf32>
    %29 = vector.shape_cast %28 : vector<8xf32> to vector<8x1xf32>
    %30 = arith.addf %27, %29 : vector<8x1xf32>
    %c0_21 = arith.constant 0 : index
    %c0_22 = arith.constant 0 : index
    %31 = vector.load %arg11[%c0_21, %c0_22] : memref<8x1xf32, #tpu.memory_space<vmem>>, vector<8x1xf32>
    tpu.vector_store %arg11[%c0_21, %c0_22], %30 {strides = array<i32>} : memref<8x1xf32, #tpu.memory_space<vmem>>, vector<8x1xf32>,
    %c0_23 = arith.constant 0 : index
    %c0_24 = arith.constant 0 : index
    %32 = vector.load %arg12[%c0_23, %c0_24] : memref<8x8xf32, #tpu.memory_space<vmem>>, vector<8x8xf32>
    %33 = vector.broadcast %22 : vector<8x1xf32> to vector<8x8xf32>
    %34 = arith.mulf %33, %32 : vector<8x8xf32>
    %35 = arith.truncf %25 : vector<8x8xf32> to vector<8x8xbf16>
    %36 = arith.truncf %15 : vector<8x8xf32> to vector<8x8xbf16>
    %cst_25 = arith.constant dense<0.000000e+00> : vector<8x8xf32>
    %37 = tpu.matmul %35, %36, %cst_25 {dimension_numbers = #tpu.dot_dimension_numbers<[1], [0], [0], [1], [0, 0, 1, 1], [], []>} : vector<8x8xbf16>, vector<8x8xbf16>, vector<8x8xf32> -> vector<8x8xf32>
    %38 = arith.addf %34, %37 : vector<8x8xf32>
    %c0_26 = arith.constant 0 : index
    %c0_27 = arith.constant 0 : index
    %39 = vector.load %arg12[%c0_26, %c0_27] : memref<8x8xf32, #tpu.memory_space<vmem>>, vector<8x8xf32>
    tpu.vector_store %arg12[%c0_26, %c0_27], %38 {strides = array<i32>} : memref<8x8xf32, #tpu.memory_space<vmem>>, vector<8x8xf32>,
    %c0_28 = arith.constant 0 : index
    %c0_29 = arith.constant 0 : index
    %40 = vector.load %arg10[%c0_28, %c0_29] : memref<8x1xf32, #tpu.memory_space<vmem>>, vector<8x1xf32>
    tpu.vector_store %arg10[%c0_28, %c0_29], %20 {strides = array<i32>} : memref<8x1xf32, #tpu.memory_space<vmem>>, vector<8x1xf32>,
    %c0_i32_30 = arith.constant 0 : i32
    %41 = arith.cmpi eq, %arg3, %c0_i32_30 : i32
    %42 = arith.extui %41 : i1 to i32
    %c0_i32_31 = arith.constant 0 : i32
    %43 = arith.cmpi ne, %42, %c0_i32_31 : i32
    scf.if %43 {
      %c0_34 = arith.constant 0 : index
      %c0_35 = arith.constant 0 : index
      %49 = vector.load %arg12[%c0_34, %c0_35] : memref<8x8xf32, #tpu.memory_space<vmem>>, vector<8x8xf32>
      %c0_36 = arith.constant 0 : index
      %c0_37 = arith.constant 0 : index
      %50 = vector.load %arg11[%c0_36, %c0_37] : memref<8x1xf32, #tpu.memory_space<vmem>>, vector<8x1xf32>
      %51 = tpu.reciprocal %50 {approx = true} : vector<8x1xf32> -> vector<8x1xf32>
      %52 = vector.broadcast %51 : vector<8x1xf32> to vector<8x8xf32>
      %53 = arith.mulf %49, %52 : vector<8x8xf32>
      %c0_38 = arith.constant 0 : index
      %c0_39 = arith.constant 0 : index
      %54 = vector.load %arg13[%c0_38, %c0_39] : memref<8x32xf32, #tpu.memory_space<vmem>>, vector<8x32xf32>
      %55 = arith.truncf %53 : vector<8x8xf32> to vector<8x8xbf16>
      %c0_40 = arith.constant 0 : index
      %c0_41 = arith.constant 0 : index
      %c0_42 = arith.constant 0 : index
      %56 = vector.load %arg7[%c0_40, %c0_41, %c0_42] : memref<1x8x32xf32, #tpu.memory_space<vmem>>, vector<1x8x32xf32>
      %57 = vector.shape_cast %56 : vector<1x8x32xf32> to vector<8x32xf32>
      %58 = arith.truncf %57 : vector<8x32xf32> to vector<8x32xbf16>
      %cst_43 = arith.constant dense<0.000000e+00> : vector<8x32xf32>
      %59 = tpu.matmul %55, %58, %cst_43 {dimension_numbers = #tpu.dot_dimension_numbers<[1], [0], [0], [1], [0, 0, 1, 1], [], []>} : vector<8x8xbf16>, vector<8x32xbf16>, vector<8x32xf32> -> vector<8x32xf32>
      %60 = arith.addf %54, %59 : vector<8x32xf32>
      %c0_44 = arith.constant 0 : index
      %c0_45 = arith.constant 0 : index
      %61 = vector.load %arg13[%c0_44, %c0_45] : memref<8x32xf32, #tpu.memory_space<vmem>>, vector<8x32xf32>
      tpu.vector_store %arg13[%c0_44, %c0_45], %60 {strides = array<i32>} : memref<8x32xf32, #tpu.memory_space<vmem>>, vector<8x32xf32>,
    } else {
    }
    %c3_i32 = arith.constant 3 : i32
    %44 = arith.cmpi eq, %arg2, %c3_i32 : i32
    %c0_i32_32 = arith.constant 0 : i32
    %45 = arith.cmpi eq, %arg3, %c0_i32_32 : i32
    %46 = arith.andi %44, %45 : i1
    %47 = arith.extui %46 : i1 to i32
    %c0_i32_33 = arith.constant 0 : i32
    %48 = arith.cmpi ne, %47, %c0_i32_33 : i32
    scf.if %48 {
      %c0_34 = arith.constant 0 : index
      %c0_35 = arith.constant 0 : index
      %49 = vector.load %arg13[%c0_34, %c0_35] : memref<8x32xf32, #tpu.memory_space<vmem>>, vector<8x32xf32>
      %c0_36 = arith.constant 0 : index
      %c0_37 = arith.constant 0 : index
      %50 = vector.load %arg8[%c0_36, %c0_37] : memref<1x32xf32, #tpu.memory_space<vmem>>, vector<1x32xf32>
      %51 = vector.broadcast %50 : vector<1x32xf32> to vector<8x32xf32>
      %52 = arith.addf %49, %51 : vector<8x32xf32>
      %c0_38 = arith.constant 0 : index
      %c0_39 = arith.constant 0 : index
      %c0_40 = arith.constant 0 : index
      %53 = vector.load %arg9[%c0_38, %c0_39, %c0_40] : memref<1x8x32xf32, #tpu.memory_space<vmem>>, vector<1x8x32xf32>
      %54 = vector.shape_cast %53 : vector<1x8x32xf32> to vector<8x32xf32>
      %55 = vector.shape_cast %52 : vector<8x32xf32> to vector<1x8x32xf32>
      tpu.vector_store %arg9[%c0_38, %c0_39, %c0_40], %55 {strides = array<i32>} : memref<1x8x32xf32, #tpu.memory_space<vmem>>, vector<1x8x32xf32>,
    } else {
    }
    return
  }
  func.func @transform_0(%arg0: i32, %arg1: i32, %arg2: i32, %arg3: i32) -> (i32, i32, i32, i32) {
    %c0_i32 = arith.constant 0 : i32
    %c0_i32_0 = arith.constant 0 : i32
    return %arg0, %arg2, %arg1, %c0_i32 : i32, i32, i32, i32
  }
  func.func @transform_1(%arg0: i32, %arg1: i32, %arg2: i32, %arg3: i32) -> (i32, i32, i32, i32) {
    %c0_i32 = arith.constant 0 : i32
    %c0_i32_0 = arith.constant 0 : i32
    return %arg0, %arg2, %arg3, %c0_i32 : i32, i32, i32, i32
  }
  func.func @transform_2(%arg0: i32, %arg1: i32, %arg2: i32, %arg3: i32) -> (i32, i32, i32, i32) {
    %c0_i32 = arith.constant 0 : i32
    %c0_i32_0 = arith.constant 0 : i32
    return %arg0, %arg2, %arg3, %c0_i32 : i32, i32, i32, i32
  }
  func.func @transform_3(%arg0: i32, %arg1: i32, %arg2: i32, %arg3: i32) -> (i32, i32, i32) {
    %c0_i32 = arith.constant 0 : i32
    %c0_i32_0 = arith.constant 0 : i32
    %c0_i32_1 = arith.constant 0 : i32
    return %arg2, %c0_i32, %c0_i32_0 : i32, i32, i32
  }
  func.func @transform_4(%arg0: i32, %arg1: i32, %arg2: i32, %arg3: i32) -> (i32, i32) {
    %c0_i32 = arith.constant 0 : i32
    %c0_i32_0 = arith.constant 0 : i32
    %c0_i32_1 = arith.constant 0 : i32
    return %c0_i32, %c0_i32_0 : i32, i32
  }
  func.func @transform_5(%arg0: i32, %arg1: i32, %arg2: i32, %arg3: i32) -> (i32, i32, i32) {
    %c0_i32 = arith.constant 0 : i32
    %c0_i32_0 = arith.constant 0 : i32
    return %arg0, %arg1, %c0_i32 : i32, i32, i32
  }
}

</mosaic_0001>

<llo_original>
// kernel: _attention_layer.5
$region0: #{_attention_layer.5}
  #allocation0 [shape = 'u32[]', space=smem, size = 0x4, offset = 0x4, fixed_abs, tag = 'smem constant byte address 0x4 - core index']
  #allocation1 [shape = 'u32[72,128]{1,0:T(1,128)}', space=vmem, size = 0x9000, scoped, tag = 'internal scratch']
  %s0 = inlined_call_operand.hbm [shape: f32[16,32], index: 0, kind: input, shape index: {}]
  %s1 = inlined_call_operand.hbm [shape: f32[32,32], index: 1, kind: input, shape index: {}]
  %s2 = inlined_call_operand.hbm [shape: f32[1,32], index: 2, kind: input, shape index: {}]
  %s3 = inlined_call_operand.vmem [shape: f32[16,32], index: 3, kind: output, shape index: {}]
  %s4 = sld [smem:[#allocation0]]
  $region57: #{_attention_layer.5} parent=0
    _
  %s6 = ssub.s32 1, %s4
  %s7 = scalar_select 0, %s6, %s4
  $region1: #{_attention_layer.5} parent=0
    #allocation2 [shape = 'u8[8192]{0}', space=vmem, size = 0x2000, scoped, tag = 'input window, operand 0']
    #allocation3 [shape = 's32[2]{0}', space=sflag, size = 0x8, scoped, tag = 'scoped memory for _attention_layer.5']
    #allocation4 [shape = 'u8[16384]{0}', space=vmem, size = 0x4000, scoped, tag = 'input window, operand 1, single buffered']
    #allocation5 [shape = 's32[1]{0}', space=sflag, size = 0x4, scoped, tag = 'scoped memory for _attention_layer.5']
    #allocation6 [shape = 'u8[512]{0}', space=vmem, size = 0x400, scoped, tag = 'input window, operand 2, single buffered']
    %8 = vsyncpa [#allocation3], 0
    %s9 = scalar_lea.sflag [#allocation3], 1
    %10 = vsyncpa %s9, 0
    %11 = vsyncpa [#allocation5], 0
    loop: start=0, step=1, limit=4
    $region2: #{_attention_layer.5} parent=1 // loop_pre_header
      _
    $region3: #{_attention_layer.5} parent=1 // loop_header
      %s13 = sphi 0, %s17
      %p14 = scmp.ge.s32.totalorder %s13, 4
      %s20 = sphi 0, %s32
      %s21 = sphi 0, %s28
      %s22 = sphi 0, %s20
      %s23 = sphi 0, %s21
      %s24 = sphi 0, %s22
      %s25 = sphi 0, %s23
      %s35 = sphi 0, %s37
      %s38 = sphi 0, %s35
      %s39 = sphi 0, %s38
      %s55 = sphi 0, %s39
      %s61 = sphi 0, %s63
      %s64 = sphi 0, %s61
      %s65 = sphi 0, %s64
      %s81 = sphi 0, %s65
      %s87 = sphi 0, %s89
      %s90 = sphi 0, %s87
      %s91 = sphi 0, %s90
      %s107 = sphi 0, %s91
      %s115 = sphi 0, %s117
      %s118 = sphi 0, %s115
      %s119 = sphi 0, %s118
      %s135 = sphi 0, %s119
    $region4: #{_attention_layer.5} parent=1 // loop_header_branch
      %16 = sbr.rel (%p14) target = $region8
    $region5: #{_attention_layer.5} parent=1 // loop_body
      %s18 = ssub.s32 %s13, 1
      %s19 = ssub.s32 %s13, 2
      %s26 = sadd.s32 1, %s21
      %p27 = scmp.ge.s32.totalorder %s26, 1
      %s28 = scalar_select %p27, 0, %s26
      %s29 = sadd.s32 1, %s20
      %s30 = scalar_select %p27, %s29, %s20
      %p31 = scmp.ge.s32.totalorder %s30, 2
      %s32 = scalar_select %p31, 0, %s30
      %s33 = ssub.s32 %s20, %s32
      %p34 = scmp.eq.s32.totalorder %s33, 0
      %s36 = sadd.s32 %s35, 1
      %s37 = scalar_select %p34, %s35, %s36
      %p40 = pneg %p34
      %p41 = scmp.eq.s32.totalorder %s13, 1
      %p42 = por %p40, %p41
      %p43 = scmp.ne.s32.totalorder %s35, %s38
      %p44 = scmp.eq.s32.totalorder %s13, 0
      %p45 = por %p43, %p44
      %p46 = scmp.ne.s32.totalorder %s35, %s38
      %p47 = scmp.eq.s32.totalorder %s18, 1
      %p48 = por %p46, %p47
      %p49 = scmp.ne.s32.totalorder %s38, %s39
      %p50 = scmp.eq.s32.totalorder %s18, 0
      %p51 = por %p49, %p50
      %p52 = scmp.ne.s32.totalorder %s38, %s39
      %p53 = scmp.eq.s32.totalorder %s19, 1
      %p54 = por %p52, %p53
      %p56 = scmp.ne.s32.totalorder %s39, %s55
      %p57 = scmp.eq.s32.totalorder %s19, 0
      %p58 = por %p56, %p57
      %s59 = ssub.s32 %s21, %s28
      %p60 = scmp.eq.s32.totalorder %s59, 0
      %s62 = sadd.s32 %s61, 1
      %s63 = scalar_select %p60, %s61, %s62
      %p66 = pneg %p60
      %p67 = scmp.eq.s32.totalorder %s13, 1
      %p68 = por %p66, %p67
      %p69 = scmp.ne.s32.totalorder %s61, %s64
      %p70 = scmp.eq.s32.totalorder %s13, 0
      %p71 = por %p69, %p70
      %p72 = scmp.ne.s32.totalorder %s61, %s64
      %p73 = scmp.eq.s32.totalorder %s18, 1
      %p74 = por %p72, %p73
      %p75 = scmp.ne.s32.totalorder %s64, %s65
      %p76 = scmp.eq.s32.totalorder %s18, 0
      %p77 = por %p75, %p76
      %p78 = scmp.ne.s32.totalorder %s64, %s65
      %p79 = scmp.eq.s32.totalorder %s19, 1
      %p80 = por %p78, %p79
      %p82 = scmp.ne.s32.totalorder %s65, %s81
      %p83 = scmp.eq.s32.totalorder %s19, 0
      %p84 = por %p82, %p83
      %s85 = ssub.s32 %s21, %s28
      %p86 = scmp.eq.s32.totalorder %s85, 0
      %s88 = sadd.s32 %s87, 1
      %s89 = scalar_select %p86, %s87, %s88
      %p92 = pneg %p86
      %p93 = scmp.eq.s32.totalorder %s13, 1
      %p94 = por %p92, %p93
      %p95 = scmp.ne.s32.totalorder %s87, %s90
      %p96 = scmp.eq.s32.totalorder %s13, 0
      %p97 = por %p95, %p96
      %p98 = scmp.ne.s32.totalorder %s87, %s90
      %p99 = scmp.eq.s32.totalorder %s18, 1
      %p100 = por %p98, %p99
      %p101 = scmp.ne.s32.totalorder %s90, %s91
      %p102 = scmp.eq.s32.totalorder %s18, 0
      %p103 = por %p101, %p102
      %p104 = scmp.ne.s32.totalorder %s90, %s91
      %p105 = scmp.eq.s32.totalorder %s19, 1
      %p106 = por %p104, %p105
      %p108 = scmp.ne.s32.totalorder %s91, %s107
      %p109 = scmp.eq.s32.totalorder %s19, 0
      %p110 = por %p108, %p109
      %s111 = ssub.s32 %s20, %s32
      %s112 = ssub.s32 %s21, %s28
      %s113 = sor.u32 %s111, %s112
      %p114 = scmp.eq.s32.totalorder %s113, 0
      %s116 = sadd.s32 %s115, 1
      %s117 = scalar_select %p114, %s115, %s116
      %p120 = pneg %p114
      %p121 = scmp.eq.s32.totalorder %s13, 1
      %p122 = por %p120, %p121
      %p123 = scmp.ne.s32.totalorder %s115, %s118
      %p124 = scmp.eq.s32.totalorder %s13, 0
      %p125 = por %p123, %p124
      %p126 = scmp.ne.s32.totalorder %s115, %s118
      %p127 = scmp.eq.s32.totalorder %s18, 1
      %p128 = por %p126, %p127
      %p129 = scmp.ne.s32.totalorder %s118, %s119
      %p130 = scmp.eq.s32.totalorder %s18, 0
      %p131 = por %p129, %p130
      %p132 = scmp.ne.s32.totalorder %s118, %s119
      %p133 = scmp.eq.s32.totalorder %s19, 1
      %p134 = por %p132, %p133
      %p136 = scmp.ne.s32.totalorder %s119, %s135
      %p137 = scmp.eq.s32.totalorder %s19, 0
      %p138 = por %p136, %p137
      %p139 = scmp.le.s32.totalorder 1, %s13
      %p140 = scmp.lt.s32.totalorder %s13, 3
      %p141 = pnand %p139, %p140
      %p142 = pneg %p141
      // Predicated region
      $region9: #{_attention_layer.5} parent=5 // pred_check
        _
      $region10: #{_attention_layer.5} parent=5 // pred_check_branch
        %144 = sbr.rel (%p141) target = $region12
      $region11: #{_attention_layer.5} parent=5 // pred_region
        %s145 = ssub.s32 %s13, 1
        // Predicated region
        $region13: #{_attention_layer.5} parent=11 // pred_check
          %p146 = pneg %p77
        $region14: #{_attention_layer.5} parent=11 // pred_check_branch
          %148 = sbr.rel (%p146) target = $region16
        $region15: #{_attention_layer.5} parent=11 // pred_region
          %150 = vsyncadd [#allocation5], 0
          %s151 = smul.addr %s23, 8
          %s152 = scalar_lea.hbm %s1, %s151
          %s153 = sshll.u32 %s152, 4
          %s154 = int_to_ptr.hbm [resolvable:$true] %s153
          %s155 = sshll.u32 [#allocation4], 4
          %s156 = int_to_ptr.vmem [resolvable:$true] %s155
          %161 = dma.hbm_to_vmem [thread:$0]  %s154, 512, %s156, [#allocation5], 128, 128, 8
        $region16: #{_attention_layer.5} parent=11 // pred_fallthru
          _
        // Predicated region
        $region17: #{_attention_layer.5} parent=11 // pred_check
          %p162 = pneg %p103
        $region18: #{_attention_layer.5} parent=11 // pred_check_branch
          %164 = sbr.rel (%p162) target = $region20
        $region19: #{_attention_layer.5} parent=11 // pred_region
          %166 = vsyncadd [#allocation5], 0
          %s167 = scalar_lea.hbm %s2, %s23
          %s169 = sshll.u32 %s167, 4
          %s170 = int_to_ptr.hbm [resolvable:$true] %s169
          %s171 = sshll.u32 [#allocation6], 4
          %s172 = int_to_ptr.vmem [resolvable:$true] %s171
          %174 = dma.hbm_to_vmem [thread:$0]  %s170, 16, %s172, [#allocation5]
        $region20: #{_attention_layer.5} parent=11 // pred_fallthru
          _
      $region12: #{_attention_layer.5} parent=5 // pred_fallthru
        _
      %p175 = scmp.lt.s32.totalorder %s13, 2
      // Predicated region
      $region21: #{_attention_layer.5} parent=5 // pred_check
        %p176 = pneg %p175
      $region22: #{_attention_layer.5} parent=5 // pred_check_branch
        %178 = sbr.rel (%p176) target = $region24
      $region23: #{_attention_layer.5} parent=5 // pred_region
        // Predicated region
        $region25: #{_attention_layer.5} parent=23 // pred_check
          %p179 = pneg %p45
        $region26: #{_attention_layer.5} parent=23 // pred_check_branch
          %181 = sbr.rel (%p179) target = $region28
        $region27: #{_attention_layer.5} parent=23 // pred_region
          %s182 = sand.u32 %s35, 1
          %s183 = scalar_lea.sflag [#allocation3], %s182
          %s184 = sand.u32 %s35, 1
          %s185 = smul.addr %s184, 8
          %s186 = scalar_lea.vmem [#allocation2], %s185
          %188 = vsyncadd %s183, 0
          %s189 = smul.addr %s20, 8
          %s190 = scalar_lea.hbm %s0, %s189
          %s192 = sshll.u32 %s190, 4
          %s193 = int_to_ptr.hbm [resolvable:$true] %s192
          %s194 = sshll.u32 %s186, 4
          %s195 = int_to_ptr.vmem [resolvable:$true] %s194
          %197 = dma.hbm_to_vmem [thread:$0]  %s193, 128, %s195, %s183
        $region28: #{_attention_layer.5} parent=23 // pred_fallthru
          _
      $region24: #{_attention_layer.5} parent=5 // pred_fallthru
        _
      %p198 = scmp.le.s32.totalorder 1, %s13
      %p199 = scmp.lt.s32.totalorder %s13, 3
      %p200 = pnand %p198, %p199
      %p201 = pneg %p200
      // Predicated region
      $region29: #{_attention_layer.5} parent=5 // pred_check
        _
      $region30: #{_attention_layer.5} parent=5 // pred_check_branch
        %203 = sbr.rel (%p200) target = $region32
      $region31: #{_attention_layer.5} parent=5 // pred_region
        %s204 = ssub.s32 %s13, 1
        %s205 = sand.u32 %s38, 1
        %s206 = scalar_lea.sflag [#allocation3], %s205
        %s207 = sand.u32 %s38, 1
        %s208 = smul.addr %s207, 8
        %s209 = scalar_lea.vmem [#allocation2], %s208
        // Predicated region
        $region33: #{_attention_layer.5} parent=31 // pred_check
          %p210 = pneg %p51
        $region34: #{_attention_layer.5} parent=31 // pred_check_branch
          %212 = sbr.rel (%p210) target = $region36
        $region35: #{_attention_layer.5} parent=31 // pred_region
          %214 = dma.done %s206, 128
        $region36: #{_attention_layer.5} parent=31 // pred_fallthru
          _
        // Predicated region
        $region37: #{_attention_layer.5} parent=31 // pred_check
          %p215 = pneg %p77
        $region38: #{_attention_layer.5} parent=31 // pred_check_branch
          %217 = sbr.rel (%p215) target = $region40
        $region39: #{_attention_layer.5} parent=31 // pred_region
          %219 = dma.done [#allocation5], 512
        $region40: #{_attention_layer.5} parent=31 // pred_fallthru
          _
        // Predicated region
        $region41: #{_attention_layer.5} parent=31 // pred_check
          %p220 = pneg %p103
        $region42: #{_attention_layer.5} parent=31 // pred_check_branch
          %222 = sbr.rel (%p220) target = $region44
        $region43: #{_attention_layer.5} parent=31 // pred_region
          %224 = dma.done [#allocation5], 16
        $region44: #{_attention_layer.5} parent=31 // pred_fallthru
          _
        %s225 = sand.u32 %s38, 1
        %s226 = scalar_lea.sflag [#allocation3], %s225
        %s227 = sand.u32 %s38, 1
        %s228 = smul.addr %s227, 8
        %s229 = scalar_lea.vmem [#allocation2], %s228
        %p230 = pneg %p51
        %p231 = pneg %p48
        %p232 = pneg %p77
        %p233 = pneg %p74
        %p234 = pneg %p103
        %p235 = pneg %p100
        %p236 = pneg %p131
        %p237 = pneg %p128
        %p238 = scmp.lt.s32.totalorder %s22, 1
        %s239 = scalar_select %p238, %s22, 1
        %p240 = scmp.lt.s32.totalorder %s23, 0
        %s241 = scalar_select %p240, %s23, 0
        %s242 = sadd.s32 %s241, %s239
        %s243 = smul.addr %s242, 8
        %s244 = scalar_lea.vmem %s3, %s243
        %p245 = scmp.lt.s32.totalorder %s22, 1
        %s246 = scalar_select %p245, %s22, 1
        %p247 = scmp.lt.s32.totalorder %s23, 0
        %s248 = scalar_select %p247, %s23, 0
        %s249 = sadd.s32 %s248, %s246
        %s250 = smul.addr %s249, 8
        %s251 = scalar_lea.vmem %s3, %s250
        %v253 = vld [vmem:[%s209] sm:$0xff]
        %v254 = vpack.c.bf16 %v253, %v253
        %v255 = vld [vmem:[#allocation4] sm:$0xff]
        %v256 = vld [vmem:[#allocation4 + $0x8] sm:$0xff]
        %v257 = vld [vmem:[#allocation4 + $0x10] sm:$0xff]
        %v258 = vld [vmem:[#allocation4 + $0x18] sm:$0xff]
        %v259 = vpack.c.bf16 %v256, %v255
        %v260 = vpack.c.bf16 %v258, %v257
        %v261 = vld [vmem:[#allocation6] sm:$0x1]
        %v263 = vperm.slane %v261, 0
        %vm265 = vcmask 261120
        %v267 = vsel %vm265, %v254, 0
        %269 = vmatpush.bf16.msra.mxu0 0
        %270 = vmatpush.bf16.msra.mxu0 0
        %271 = vmatpush.bf16.msra.mxu0 0
        %272 = vmatpush.bf16.msra.mxu0 0
        %273 = vmatpush.bf16.msra.mxu0 0
        %274 = vmatpush.bf16.msra.mxu0 0
        %275 = vmatpush.bf16.msra.mxu0 %v260
        %276 = vmatpush.bf16.msra.mxu0 %v259
        %277 = vmatmul.bf16.gmra.mxu0 %v267
        %v278 = vpop.f32.mrf.mxu0
        %v279 = vadd.f32 %v263, %v278
        %v280 = vpop.f32.mrf.mxu0
        %281 = vdwg.mxu0
        %282 = vst.msk [vmem:[%s251] sm:$0xff] %vm265, %v279
        %p283 = scmp.lt.s32.totalorder %s22, 1
        %s284 = scalar_select %p283, %s22, 1
        %p285 = scmp.lt.s32.totalorder %s23, 0
        %s286 = scalar_select %p285, %s23, 0
        %s287 = sadd.s32 %s286, %s284
        %s288 = smul.addr %s287, 8
        %s289 = scalar_lea.vmem %s3, %s288
        // Predicated region
        $region45: #{_attention_layer.5} parent=31 // pred_check
          %p290 = pneg %p128
        $region46: #{_attention_layer.5} parent=31 // pred_check_branch
          %292 = sbr.rel (%p290) target = $region48
        $region47: #{_attention_layer.5} parent=31 // pred_region
          _
        $region48: #{_attention_layer.5} parent=31 // pred_fallthru
          _
      $region32: #{_attention_layer.5} parent=5 // pred_fallthru
        _
      %p293 = scmp.le.s32.totalorder 2, %s13
      // Predicated region
      $region49: #{_attention_layer.5} parent=5 // pred_check
        %p294 = pneg %p293
      $region50: #{_attention_layer.5} parent=5 // pred_check_branch
        %296 = sbr.rel (%p294) target = $region52
      $region51: #{_attention_layer.5} parent=5 // pred_region
        %s297 = ssub.s32 %s13, 2
        // Predicated region
        $region53: #{_attention_layer.5} parent=51 // pred_check
          %p298 = pneg %p134
        $region54: #{_attention_layer.5} parent=51 // pred_check_branch
          %300 = sbr.rel (%p298) target = $region56
        $region55: #{_attention_layer.5} parent=51 // pred_region
          %p301 = scmp.lt.s32.totalorder %s24, 1
          %s302 = scalar_select %p301, %s24, 1
          %p303 = scmp.lt.s32.totalorder %s25, 0
          %s304 = scalar_select %p303, %s25, 0
          %s305 = sadd.s32 %s304, %s302
          %s306 = smul.addr %s305, 8
          %s307 = scalar_lea.vmem %s3, %s306
        $region56: #{_attention_layer.5} parent=51 // pred_fallthru
          _
      $region52: #{_attention_layer.5} parent=5 // pred_fallthru
        _
    $region6: #{_attention_layer.5} parent=1 // loop_footer
      %s17 = sadd.s32 1, %s13
    $region7: #{_attention_layer.5} parent=1 // loop_footer_branch
      %12 = sbr.rel target = $region3
    $region8: #{_attention_layer.5} parent=1 // loop_exit
      _
    %308 = vsyncpa [#allocation3], 1
    %s309 = scalar_lea.sflag [#allocation3], 1
    %310 = vsyncpa %s309, 1
    %311 = vsyncpa [#allocation5], 1

// kernel: _attention_layer.6
$region0: #{_attention_layer.6}
  #allocation0 [shape = 'u32[]', space=smem, size = 0x4, offset = 0x4, fixed_abs, tag = 'smem constant byte address 0x4 - core index']
  #allocation1 [shape = 'u32[72,128]{1,0:T(1,128)}', space=vmem, size = 0x9000, scoped, tag = 'internal scratch']
  %s0 = inlined_call_operand.hbm [shape: f32[16,32], index: 0, kind: input, shape index: {}]
  %s1 = inlined_call_operand.vmem [shape: f32[32,32], index: 1, kind: input, shape index: {}]
  %s2 = inlined_call_operand.vmem [shape: f32[1,32], index: 2, kind: input, shape index: {}]
  %s3 = inlined_call_operand.vmem [shape: f32[16,32], index: 3, kind: output, shape index: {}]
  %s4 = sld [smem:[#allocation0]]
  $region49: #{_attention_layer.6} parent=0
    _
  %s6 = ssub.s32 1, %s4
  %s7 = scalar_select 0, %s6, %s4
  $region1: #{_attention_layer.6} parent=0
    #allocation2 [shape = 'u8[8192]{0}', space=vmem, size = 0x2000, scoped, tag = 'input window, operand 0']
    #allocation3 [shape = 's32[2]{0}', space=sflag, size = 0x8, scoped, tag = 'scoped memory for _attention_layer.6']
    %8 = vsyncpa [#allocation3], 0
    %s9 = scalar_lea.sflag [#allocation3], 1
    %10 = vsyncpa %s9, 0
    loop: start=0, step=1, limit=4
    $region2: #{_attention_layer.6} parent=1 // loop_pre_header
      _
    $region3: #{_attention_layer.6} parent=1 // loop_header
      %s12 = sphi 0, %s16
      %p13 = scmp.ge.s32.totalorder %s12, 4
      %s19 = sphi 0, %s31
      %s20 = sphi 0, %s27
      %s21 = sphi 0, %s19
      %s22 = sphi 0, %s20
      %s23 = sphi 0, %s21
      %s24 = sphi 0, %s22
      %s34 = sphi 0, %s36
      %s37 = sphi 0, %s34
      %s38 = sphi 0, %s37
      %s54 = sphi 0, %s38
      %s60 = sphi 0, %s62
      %s63 = sphi 0, %s60
      %s64 = sphi 0, %s63
      %s80 = sphi 0, %s64
      %s86 = sphi 0, %s88
      %s89 = sphi 0, %s86
      %s90 = sphi 0, %s89
      %s106 = sphi 0, %s90
      %s114 = sphi 0, %s116
      %s117 = sphi 0, %s114
      %s118 = sphi 0, %s117
      %s134 = sphi 0, %s118
    $region4: #{_attention_layer.6} parent=1 // loop_header_branch
      %15 = sbr.rel (%p13) target = $region8
    $region5: #{_attention_layer.6} parent=1 // loop_body
      %s17 = ssub.s32 %s12, 1
      %s18 = ssub.s32 %s12, 2
      %s25 = sadd.s32 1, %s20
      %p26 = scmp.ge.s32.totalorder %s25, 1
      %s27 = scalar_select %p26, 0, %s25
      %s28 = sadd.s32 1, %s19
      %s29 = scalar_select %p26, %s28, %s19
      %p30 = scmp.ge.s32.totalorder %s29, 2
      %s31 = scalar_select %p30, 0, %s29
      %s32 = ssub.s32 %s19, %s31
      %p33 = scmp.eq.s32.totalorder %s32, 0
      %s35 = sadd.s32 %s34, 1
      %s36 = scalar_select %p33, %s34, %s35
      %p39 = pneg %p33
      %p40 = scmp.eq.s32.totalorder %s12, 1
      %p41 = por %p39, %p40
      %p42 = scmp.ne.s32.totalorder %s34, %s37
      %p43 = scmp.eq.s32.totalorder %s12, 0
      %p44 = por %p42, %p43
      %p45 = scmp.ne.s32.totalorder %s34, %s37
      %p46 = scmp.eq.s32.totalorder %s17, 1
      %p47 = por %p45, %p46
      %p48 = scmp.ne.s32.totalorder %s37, %s38
      %p49 = scmp.eq.s32.totalorder %s17, 0
      %p50 = por %p48, %p49
      %p51 = scmp.ne.s32.totalorder %s37, %s38
      %p52 = scmp.eq.s32.totalorder %s18, 1
      %p53 = por %p51, %p52
      %p55 = scmp.ne.s32.totalorder %s38, %s54
      %p56 = scmp.eq.s32.totalorder %s18, 0
      %p57 = por %p55, %p56
      %s58 = ssub.s32 %s20, %s27
      %p59 = scmp.eq.s32.totalorder %s58, 0
      %s61 = sadd.s32 %s60, 1
      %s62 = scalar_select %p59, %s60, %s61
      %p65 = pneg %p59
      %p66 = scmp.eq.s32.totalorder %s12, 1
      %p67 = por %p65, %p66
      %p68 = scmp.ne.s32.totalorder %s60, %s63
      %p69 = scmp.eq.s32.totalorder %s12, 0
      %p70 = por %p68, %p69
      %p71 = scmp.ne.s32.totalorder %s60, %s63
      %p72 = scmp.eq.s32.totalorder %s17, 1
      %p73 = por %p71, %p72
      %p74 = scmp.ne.s32.totalorder %s63, %s64
      %p75 = scmp.eq.s32.totalorder %s17, 0
      %p76 = por %p74, %p75
      %p77 = scmp.ne.s32.totalorder %s63, %s64
      %p78 = scmp.eq.s32.totalorder %s18, 1
      %p79 = por %p77, %p78
      %p81 = scmp.ne.s32.totalorder %s64, %s80
      %p82 = scmp.eq.s32.totalorder %s18, 0
      %p83 = por %p81, %p82
      %s84 = ssub.s32 %s20, %s27
      %p85 = scmp.eq.s32.totalorder %s84, 0
      %s87 = sadd.s32 %s86, 1
      %s88 = scalar_select %p85, %s86, %s87
      %p91 = pneg %p85
      %p92 = scmp.eq.s32.totalorder %s12, 1
      %p93 = por %p91, %p92
      %p94 = scmp.ne.s32.totalorder %s86, %s89
      %p95 = scmp.eq.s32.totalorder %s12, 0
      %p96 = por %p94, %p95
      %p97 = scmp.ne.s32.totalorder %s86, %s89
      %p98 = scmp.eq.s32.totalorder %s17, 1
      %p99 = por %p97, %p98
      %p100 = scmp.ne.s32.totalorder %s89, %s90
      %p101 = scmp.eq.s32.totalorder %s17, 0
      %p102 = por %p100, %p101
      %p103 = scmp.ne.s32.totalorder %s89, %s90
      %p104 = scmp.eq.s32.totalorder %s18, 1
      %p105 = por %p103, %p104
      %p107 = scmp.ne.s32.totalorder %s90, %s106
      %p108 = scmp.eq.s32.totalorder %s18, 0
      %p109 = por %p107, %p108
      %s110 = ssub.s32 %s19, %s31
      %s111 = ssub.s32 %s20, %s27
      %s112 = sor.u32 %s110, %s111
      %p113 = scmp.eq.s32.totalorder %s112, 0
      %s115 = sadd.s32 %s114, 1
      %s116 = scalar_select %p113, %s114, %s115
      %p119 = pneg %p113
      %p120 = scmp.eq.s32.totalorder %s12, 1
      %p121 = por %p119, %p120
      %p122 = scmp.ne.s32.totalorder %s114, %s117
      %p123 = scmp.eq.s32.totalorder %s12, 0
      %p124 = por %p122, %p123
      %p125 = scmp.ne.s32.totalorder %s114, %s117
      %p126 = scmp.eq.s32.totalorder %s17, 1
      %p127 = por %p125, %p126
      %p128 = scmp.ne.s32.totalorder %s117, %s118
      %p129 = scmp.eq.s32.totalorder %s17, 0
      %p130 = por %p128, %p129
      %p131 = scmp.ne.s32.totalorder %s117, %s118
      %p132 = scmp.eq.s32.totalorder %s18, 1
      %p133 = por %p131, %p132
      %p135 = scmp.ne.s32.totalorder %s118, %s134
      %p136 = scmp.eq.s32.totalorder %s18, 0
      %p137 = por %p135, %p136
      %p138 = scmp.le.s32.totalorder 1, %s12
      %p139 = scmp.lt.s32.totalorder %s12, 3
      %p140 = pnand %p138, %p139
      %p141 = pneg %p140
      // Predicated region
      $region9: #{_attention_layer.6} parent=5 // pred_check
        _
      $region10: #{_attention_layer.6} parent=5 // pred_check_branch
        %143 = sbr.rel (%p140) target = $region12
      $region11: #{_attention_layer.6} parent=5 // pred_region
        %s144 = ssub.s32 %s12, 1
        // Predicated region
        $region13: #{_attention_layer.6} parent=11 // pred_check
          %p145 = pneg %p76
        $region14: #{_attention_layer.6} parent=11 // pred_check_branch
          %147 = sbr.rel (%p145) target = $region16
        $region15: #{_attention_layer.6} parent=11 // pred_region
          %p148 = scmp.lt.s32.totalorder %s22, 0
          %s149 = scalar_select %p148, %s22, 0
          %s150 = smul.addr %s149, 8
          %s151 = scalar_lea.vmem %s1, %s150
        $region16: #{_attention_layer.6} parent=11 // pred_fallthru
          _
        // Predicated region
        $region17: #{_attention_layer.6} parent=11 // pred_check
          %p152 = pneg %p102
        $region18: #{_attention_layer.6} parent=11 // pred_check_branch
          %154 = sbr.rel (%p152) target = $region20
        $region19: #{_attention_layer.6} parent=11 // pred_region
          %p155 = scmp.lt.s32.totalorder %s22, 0
          %s156 = scalar_select %p155, %s22, 0
          %s157 = scalar_lea.vmem %s2, %s156
        $region20: #{_attention_layer.6} parent=11 // pred_fallthru
          _
      $region12: #{_attention_layer.6} parent=5 // pred_fallthru
        _
      %p158 = scmp.lt.s32.totalorder %s12, 2
      // Predicated region
      $region21: #{_attention_layer.6} parent=5 // pred_check
        %p159 = pneg %p158
      $region22: #{_attention_layer.6} parent=5 // pred_check_branch
        %161 = sbr.rel (%p159) target = $region24
      $region23: #{_attention_layer.6} parent=5 // pred_region
        // Predicated region
        $region25: #{_attention_layer.6} parent=23 // pred_check
          %p162 = pneg %p44
        $region26: #{_attention_layer.6} parent=23 // pred_check_branch
          %164 = sbr.rel (%p162) target = $region28
        $region27: #{_attention_layer.6} parent=23 // pred_region
          %s165 = sand.u32 %s34, 1
          %s166 = scalar_lea.sflag [#allocation3], %s165
          %s167 = sand.u32 %s34, 1
          %s168 = smul.addr %s167, 8
          %s169 = scalar_lea.vmem [#allocation2], %s168
          %171 = vsyncadd %s166, 0
          %s172 = smul.addr %s19, 8
          %s173 = scalar_lea.hbm %s0, %s172
          %s175 = sshll.u32 %s173, 4
          %s176 = int_to_ptr.hbm [resolvable:$true] %s175
          %s177 = sshll.u32 %s169, 4
          %s178 = int_to_ptr.vmem [resolvable:$true] %s177
          %180 = dma.hbm_to_vmem [thread:$0]  %s176, 128, %s178, %s166
        $region28: #{_attention_layer.6} parent=23 // pred_fallthru
          _
      $region24: #{_attention_layer.6} parent=5 // pred_fallthru
        _
      %p181 = scmp.le.s32.totalorder 1, %s12
      %p182 = scmp.lt.s32.totalorder %s12, 3
      %p183 = pnand %p181, %p182
      %p184 = pneg %p183
      // Predicated region
      $region29: #{_attention_layer.6} parent=5 // pred_check
        _
      $region30: #{_attention_layer.6} parent=5 // pred_check_branch
        %186 = sbr.rel (%p183) target = $region32
      $region31: #{_attention_layer.6} parent=5 // pred_region
        %s187 = ssub.s32 %s12, 1
        %s188 = sand.u32 %s37, 1
        %s189 = scalar_lea.sflag [#allocation3], %s188
        %s190 = sand.u32 %s37, 1
        %s191 = smul.addr %s190, 8
        %s192 = scalar_lea.vmem [#allocation2], %s191
        // Predicated region
        $region33: #{_attention_layer.6} parent=31 // pred_check
          %p193 = pneg %p50
        $region34: #{_attention_layer.6} parent=31 // pred_check_branch
          %195 = sbr.rel (%p193) target = $region36
        $region35: #{_attention_layer.6} parent=31 // pred_region
          %197 = dma.done %s189, 128
        $region36: #{_attention_layer.6} parent=31 // pred_fallthru
          _
        %s198 = sand.u32 %s37, 1
        %s199 = scalar_lea.sflag [#allocation3], %s198
        %s200 = sand.u32 %s37, 1
        %s201 = smul.addr %s200, 8
        %s202 = scalar_lea.vmem [#allocation2], %s201
        %p203 = pneg %p50
        %p204 = pneg %p47
        %p205 = scmp.lt.s32.totalorder %s22, 0
        %s206 = scalar_select %p205, %s22, 0
        %s207 = smul.addr %s206, 8
        %s208 = scalar_lea.vmem %s1, %s207
        %p209 = pneg %p76
        %p210 = pneg %p73
        %p211 = scmp.lt.s32.totalorder %s22, 0
        %s212 = scalar_select %p211, %s22, 0
        %s213 = scalar_lea.vmem %s2, %s212
        %p214 = pneg %p102
        %p215 = pneg %p99
        %p216 = pneg %p130
        %p217 = pneg %p127
        %p218 = scmp.lt.s32.totalorder %s21, 1
        %s219 = scalar_select %p218, %s21, 1
        %p220 = scmp.lt.s32.totalorder %s22, 0
        %s221 = scalar_select %p220, %s22, 0
        %s222 = sadd.s32 %s221, %s219
        %s223 = smul.addr %s222, 8
        %s224 = scalar_lea.vmem %s3, %s223
        %p225 = scmp.lt.s32.totalorder %s22, 0
        %s226 = scalar_select %p225, %s22, 0
        %s227 = smul.addr %s226, 8
        %s228 = scalar_lea.vmem %s1, %s227
        %p229 = scmp.lt.s32.totalorder %s22, 0
        %s230 = scalar_select %p229, %s22, 0
        %s231 = scalar_lea.vmem %s2, %s230
        %p232 = scmp.lt.s32.totalorder %s21, 1
        %s233 = scalar_select %p232, %s21, 1
        %p234 = scmp.lt.s32.totalorder %s22, 0
        %s235 = scalar_select %p234, %s22, 0
        %s236 = sadd.s32 %s235, %s233
        %s237 = smul.addr %s236, 8
        %s238 = scalar_lea.vmem %s3, %s237
        %v240 = vld [vmem:[%s192] sm:$0xff]
        %v241 = vpack.c.bf16 %v240, %v240
        %v242 = vld [vmem:[%s228] sm:$0xff]
        %v243 = vld [vmem:[%s228 + $0x8] sm:$0xff]
        %v244 = vld [vmem:[%s228 + $0x10] sm:$0xff]
        %v245 = vld [vmem:[%s228 + $0x18] sm:$0xff]
        %v246 = vpack.c.bf16 %v243, %v242
        %v247 = vpack.c.bf16 %v245, %v244
        %v248 = vld [vmem:[%s231] sm:$0x1]
        %v250 = vperm.slane %v248, 0
        %vm252 = vcmask 261120
        %v254 = vsel %vm252, %v241, 0
        %256 = vmatpush.bf16.msra.mxu0 0
        %257 = vmatpush.bf16.msra.mxu0 0
        %258 = vmatpush.bf16.msra.mxu0 0
        %259 = vmatpush.bf16.msra.mxu0 0
        %260 = vmatpush.bf16.msra.mxu0 0
        %261 = vmatpush.bf16.msra.mxu0 0
        %262 = vmatpush.bf16.msra.mxu0 %v247
        %263 = vmatpush.bf16.msra.mxu0 %v246
        %264 = vmatmul.bf16.gmra.mxu0 %v254
        %v265 = vpop.f32.mrf.mxu0
        %v266 = vadd.f32 %v250, %v265
        %v267 = vpop.f32.mrf.mxu0
        %268 = vdwg.mxu0
        %269 = vst.msk [vmem:[%s238] sm:$0xff] %vm252, %v266
        %p270 = scmp.lt.s32.totalorder %s21, 1
        %s271 = scalar_select %p270, %s21, 1
        %p272 = scmp.lt.s32.totalorder %s22, 0
        %s273 = scalar_select %p272, %s22, 0
        %s274 = sadd.s32 %s273, %s271
        %s275 = smul.addr %s274, 8
        %s276 = scalar_lea.vmem %s3, %s275
        // Predicated region
        $region37: #{_attention_layer.6} parent=31 // pred_check
          %p277 = pneg %p127
        $region38: #{_attention_layer.6} parent=31 // pred_check_branch
          %279 = sbr.rel (%p277) target = $region40
        $region39: #{_attention_layer.6} parent=31 // pred_region
          _
        $region40: #{_attention_layer.6} parent=31 // pred_fallthru
          _
      $region32: #{_attention_layer.6} parent=5 // pred_fallthru
        _
      %p280 = scmp.le.s32.totalorder 2, %s12
      // Predicated region
      $region41: #{_attention_layer.6} parent=5 // pred_check
        %p281 = pneg %p280
      $region42: #{_attention_layer.6} parent=5 // pred_check_branch
        %283 = sbr.rel (%p281) target = $region44
      $region43: #{_attention_layer.6} parent=5 // pred_region
        %s284 = ssub.s32 %s12, 2
        // Predicated region
        $region45: #{_attention_layer.6} parent=43 // pred_check
          %p285 = pneg %p133
        $region46: #{_attention_layer.6} parent=43 // pred_check_branch
          %287 = sbr.rel (%p285) target = $region48
        $region47: #{_attention_layer.6} parent=43 // pred_region
          %p288 = scmp.lt.s32.totalorder %s23, 1
          %s289 = scalar_select %p288, %s23, 1
          %p290 = scmp.lt.s32.totalorder %s24, 0
          %s291 = scalar_select %p290, %s24, 0
          %s292 = sadd.s32 %s291, %s289
          %s293 = smul.addr %s292, 8
          %s294 = scalar_lea.vmem %s3, %s293
        $region48: #{_attention_layer.6} parent=43 // pred_fallthru
          _
      $region44: #{_attention_layer.6} parent=5 // pred_fallthru
        _
    $region6: #{_attention_layer.6} parent=1 // loop_footer
      %s16 = sadd.s32 1, %s12
    $region7: #{_attention_layer.6} parent=1 // loop_footer_branch
      %11 = sbr.rel target = $region3
    $region8: #{_attention_layer.6} parent=1 // loop_exit
      _
    %295 = vsyncpa [#allocation3], 1
    %s296 = scalar_lea.sflag [#allocation3], 1
    %297 = vsyncpa %s296, 1

// kernel: _attention_layer.4
$region0: #{_attention_layer.4}
  #allocation0 [shape = 'u32[]', space=smem, size = 0x4, offset = 0x4, fixed_abs, tag = 'smem constant byte address 0x4 - core index']
  #allocation1 [shape = 'u32[72,128]{1,0:T(1,128)}', space=vmem, size = 0x9000, scoped, tag = 'internal scratch']
  %s0 = inlined_call_operand.vmem [shape: f32[16,32], index: 0, kind: input, shape index: {}]
  %s1 = inlined_call_operand.vmem [shape: f32[32,32], index: 1, kind: input, shape index: {}]
  %s2 = inlined_call_operand.vmem [shape: f32[1,32], index: 2, kind: input, shape index: {}]
  %s3 = inlined_call_operand.vmem [shape: f32[16,32], index: 3, kind: output, shape index: {}]
  %s4 = sld [smem:[#allocation0]]
  $region45: #{_attention_layer.4} parent=0
    _
  %s6 = ssub.s32 1, %s4
  %s7 = scalar_select 0, %s6, %s4
  loop: start=0, step=1, limit=4
  $region2: #{_attention_layer.4} parent=0 // loop_pre_header
    _
  $region3: #{_attention_layer.4} parent=0 // loop_header
    %s9 = sphi 0, %s13
    %p10 = scmp.ge.s32.totalorder %s9, 4
    %s16 = sphi 0, %s28
    %s17 = sphi 0, %s24
    %s18 = sphi 0, %s16
    %s19 = sphi 0, %s17
    %s20 = sphi 0, %s18
    %s21 = sphi 0, %s19
    %s31 = sphi 0, %s33
    %s34 = sphi 0, %s31
    %s35 = sphi 0, %s34
    %s51 = sphi 0, %s35
    %s57 = sphi 0, %s59
    %s60 = sphi 0, %s57
    %s61 = sphi 0, %s60
    %s77 = sphi 0, %s61
    %s83 = sphi 0, %s85
    %s86 = sphi 0, %s83
    %s87 = sphi 0, %s86
    %s103 = sphi 0, %s87
    %s111 = sphi 0, %s113
    %s114 = sphi 0, %s111
    %s115 = sphi 0, %s114
    %s131 = sphi 0, %s115
  $region4: #{_attention_layer.4} parent=0 // loop_header_branch
    %12 = sbr.rel (%p10) target = $region8
  $region5: #{_attention_layer.4} parent=0 // loop_body
    %s14 = ssub.s32 %s9, 1
    %s15 = ssub.s32 %s9, 2
    %s22 = sadd.s32 1, %s17
    %p23 = scmp.ge.s32.totalorder %s22, 1
    %s24 = scalar_select %p23, 0, %s22
    %s25 = sadd.s32 1, %s16
    %s26 = scalar_select %p23, %s25, %s16
    %p27 = scmp.ge.s32.totalorder %s26, 2
    %s28 = scalar_select %p27, 0, %s26
    %s29 = ssub.s32 %s16, %s28
    %p30 = scmp.eq.s32.totalorder %s29, 0
    %s32 = sadd.s32 %s31, 1
    %s33 = scalar_select %p30, %s31, %s32
    %p36 = pneg %p30
    %p37 = scmp.eq.s32.totalorder %s9, 1
    %p38 = por %p36, %p37
    %p39 = scmp.ne.s32.totalorder %s31, %s34
    %p40 = scmp.eq.s32.totalorder %s9, 0
    %p41 = por %p39, %p40
    %p42 = scmp.ne.s32.totalorder %s31, %s34
    %p43 = scmp.eq.s32.totalorder %s14, 1
    %p44 = por %p42, %p43
    %p45 = scmp.ne.s32.totalorder %s34, %s35
    %p46 = scmp.eq.s32.totalorder %s14, 0
    %p47 = por %p45, %p46
    %p48 = scmp.ne.s32.totalorder %s34, %s35
    %p49 = scmp.eq.s32.totalorder %s15, 1
    %p50 = por %p48, %p49
    %p52 = scmp.ne.s32.totalorder %s35, %s51
    %p53 = scmp.eq.s32.totalorder %s15, 0
    %p54 = por %p52, %p53
    %s55 = ssub.s32 %s17, %s24
    %p56 = scmp.eq.s32.totalorder %s55, 0
    %s58 = sadd.s32 %s57, 1
    %s59 = scalar_select %p56, %s57, %s58
    %p62 = pneg %p56
    %p63 = scmp.eq.s32.totalorder %s9, 1
    %p64 = por %p62, %p63
    %p65 = scmp.ne.s32.totalorder %s57, %s60
    %p66 = scmp.eq.s32.totalorder %s9, 0
    %p67 = por %p65, %p66
    %p68 = scmp.ne.s32.totalorder %s57, %s60
    %p69 = scmp.eq.s32.totalorder %s14, 1
    %p70 = por %p68, %p69
    %p71 = scmp.ne.s32.totalorder %s60, %s61
    %p72 = scmp.eq.s32.totalorder %s14, 0
    %p73 = por %p71, %p72
    %p74 = scmp.ne.s32.totalorder %s60, %s61
    %p75 = scmp.eq.s32.totalorder %s15, 1
    %p76 = por %p74, %p75
    %p78 = scmp.ne.s32.totalorder %s61, %s77
    %p79 = scmp.eq.s32.totalorder %s15, 0
    %p80 = por %p78, %p79
    %s81 = ssub.s32 %s17, %s24
    %p82 = scmp.eq.s32.totalorder %s81, 0
    %s84 = sadd.s32 %s83, 1
    %s85 = scalar_select %p82, %s83, %s84
    %p88 = pneg %p82
    %p89 = scmp.eq.s32.totalorder %s9, 1
    %p90 = por %p88, %p89
    %p91 = scmp.ne.s32.totalorder %s83, %s86
    %p92 = scmp.eq.s32.totalorder %s9, 0
    %p93 = por %p91, %p92
    %p94 = scmp.ne.s32.totalorder %s83, %s86
    %p95 = scmp.eq.s32.totalorder %s14, 1
    %p96 = por %p94, %p95
    %p97 = scmp.ne.s32.totalorder %s86, %s87
    %p98 = scmp.eq.s32.totalorder %s14, 0
    %p99 = por %p97, %p98
    %p100 = scmp.ne.s32.totalorder %s86, %s87
    %p101 = scmp.eq.s32.totalorder %s15, 1
    %p102 = por %p100, %p101
    %p104 = scmp.ne.s32.totalorder %s87, %s103
    %p105 = scmp.eq.s32.totalorder %s15, 0
    %p106 = por %p104, %p105
    %s107 = ssub.s32 %s16, %s28
    %s108 = ssub.s32 %s17, %s24
    %s109 = sor.u32 %s107, %s108
    %p110 = scmp.eq.s32.totalorder %s109, 0
    %s112 = sadd.s32 %s111, 1
    %s113 = scalar_select %p110, %s111, %s112
    %p116 = pneg %p110
    %p117 = scmp.eq.s32.totalorder %s9, 1
    %p118 = por %p116, %p117
    %p119 = scmp.ne.s32.totalorder %s111, %s114
    %p120 = scmp.eq.s32.totalorder %s9, 0
    %p121 = por %p119, %p120
    %p122 = scmp.ne.s32.totalorder %s111, %s114
    %p123 = scmp.eq.s32.totalorder %s14, 1
    %p124 = por %p122, %p123
    %p125 = scmp.ne.s32.totalorder %s114, %s115
    %p126 = scmp.eq.s32.totalorder %s14, 0
    %p127 = por %p125, %p126
    %p128 = scmp.ne.s32.totalorder %s114, %s115
    %p129 = scmp.eq.s32.totalorder %s15, 1
    %p130 = por %p128, %p129
    %p132 = scmp.ne.s32.totalorder %s115, %s131
    %p133 = scmp.eq.s32.totalorder %s15, 0
    %p134 = por %p132, %p133
    %p135 = scmp.le.s32.totalorder 1, %s9
    %p136 = scmp.lt.s32.totalorder %s9, 3
    %p137 = pnand %p135, %p136
    %p138 = pneg %p137
    // Predicated region
    $region9: #{_attention_layer.4} parent=5 // pred_check
      _
    $region10: #{_attention_layer.4} parent=5 // pred_check_branch
      %140 = sbr.rel (%p137) target = $region12
    $region11: #{_attention_layer.4} parent=5 // pred_region
      %s141 = ssub.s32 %s9, 1
      // Predicated region
      $region13: #{_attention_layer.4} parent=11 // pred_check
        %p142 = pneg %p73
      $region14: #{_attention_layer.4} parent=11 // pred_check_branch
        %144 = sbr.rel (%p142) target = $region16
      $region15: #{_attention_layer.4} parent=11 // pred_region
        %p145 = scmp.lt.s32.totalorder %s19, 0
        %s146 = scalar_select %p145, %s19, 0
        %s147 = smul.addr %s146, 8
        %s148 = scalar_lea.vmem %s1, %s147
      $region16: #{_attention_layer.4} parent=11 // pred_fallthru
        _
      // Predicated region
      $region17: #{_attention_layer.4} parent=11 // pred_check
        %p149 = pneg %p99
      $region18: #{_attention_layer.4} parent=11 // pred_check_branch
        %151 = sbr.rel (%p149) target = $region20
      $region19: #{_attention_layer.4} parent=11 // pred_region
        %p152 = scmp.lt.s32.totalorder %s19, 0
        %s153 = scalar_select %p152, %s19, 0
        %s154 = scalar_lea.vmem %s2, %s153
      $region20: #{_attention_layer.4} parent=11 // pred_fallthru
        _
    $region12: #{_attention_layer.4} parent=5 // pred_fallthru
      _
    %p155 = scmp.lt.s32.totalorder %s9, 2
    // Predicated region
    $region21: #{_attention_layer.4} parent=5 // pred_check
      %p156 = pneg %p155
    $region22: #{_attention_layer.4} parent=5 // pred_check_branch
      %158 = sbr.rel (%p156) target = $region24
    $region23: #{_attention_layer.4} parent=5 // pred_region
      // Predicated region
      $region25: #{_attention_layer.4} parent=23 // pred_check
        %p159 = pneg %p41
      $region26: #{_attention_layer.4} parent=23 // pred_check_branch
        %161 = sbr.rel (%p159) target = $region28
      $region27: #{_attention_layer.4} parent=23 // pred_region
        %p162 = scmp.lt.s32.totalorder %s16, 1
        %s163 = scalar_select %p162, %s16, 1
        %s164 = smul.addr %s163, 8
        %s165 = scalar_lea.vmem %s0, %s164
      $region28: #{_attention_layer.4} parent=23 // pred_fallthru
        _
    $region24: #{_attention_layer.4} parent=5 // pred_fallthru
      _
    %p166 = scmp.le.s32.totalorder 1, %s9
    %p167 = scmp.lt.s32.totalorder %s9, 3
    %p168 = pnand %p166, %p167
    %p169 = pneg %p168
    // Predicated region
    $region29: #{_attention_layer.4} parent=5 // pred_check
      _
    $region30: #{_attention_layer.4} parent=5 // pred_check_branch
      %171 = sbr.rel (%p168) target = $region32
    $region31: #{_attention_layer.4} parent=5 // pred_region
      %s172 = ssub.s32 %s9, 1
      %p173 = scmp.lt.s32.totalorder %s18, 1
      %s174 = scalar_select %p173, %s18, 1
      %s175 = smul.addr %s174, 8
      %s176 = scalar_lea.vmem %s0, %s175
      %p177 = pneg %p47
      %p178 = pneg %p44
      %p179 = scmp.lt.s32.totalorder %s19, 0
      %s180 = scalar_select %p179, %s19, 0
      %s181 = smul.addr %s180, 8
      %s182 = scalar_lea.vmem %s1, %s181
      %p183 = pneg %p73
      %p184 = pneg %p70
      %p185 = scmp.lt.s32.totalorder %s19, 0
      %s186 = scalar_select %p185, %s19, 0
      %s187 = scalar_lea.vmem %s2, %s186
      %p188 = pneg %p99
      %p189 = pneg %p96
      %p190 = pneg %p127
      %p191 = pneg %p124
      %p192 = scmp.lt.s32.totalorder %s18, 1
      %s193 = scalar_select %p192, %s18, 1
      %p194 = scmp.lt.s32.totalorder %s19, 0
      %s195 = scalar_select %p194, %s19, 0
      %s196 = sadd.s32 %s195, %s193
      %s197 = smul.addr %s196, 8
      %s198 = scalar_lea.vmem %s3, %s197
      %p199 = scmp.lt.s32.totalorder %s18, 1
      %s200 = scalar_select %p199, %s18, 1
      %s201 = smul.addr %s200, 8
      %s202 = scalar_lea.vmem %s0, %s201
      %p203 = scmp.lt.s32.totalorder %s19, 0
      %s204 = scalar_select %p203, %s19, 0
      %s205 = smul.addr %s204, 8
      %s206 = scalar_lea.vmem %s1, %s205
      %p207 = scmp.lt.s32.totalorder %s19, 0
      %s208 = scalar_select %p207, %s19, 0
      %s209 = scalar_lea.vmem %s2, %s208
      %p210 = scmp.lt.s32.totalorder %s18, 1
      %s211 = scalar_select %p210, %s18, 1
      %p212 = scmp.lt.s32.totalorder %s19, 0
      %s213 = scalar_select %p212, %s19, 0
      %s214 = sadd.s32 %s213, %s211
      %s215 = smul.addr %s214, 8
      %s216 = scalar_lea.vmem %s3, %s215
      %v218 = vld [vmem:[%s202] sm:$0xff]
      %v219 = vpack.c.bf16 %v218, %v218
      %v220 = vld [vmem:[%s206] sm:$0xff]
      %v221 = vld [vmem:[%s206 + $0x8] sm:$0xff]
      %v222 = vld [vmem:[%s206 + $0x10] sm:$0xff]
      %v223 = vld [vmem:[%s206 + $0x18] sm:$0xff]
      %v224 = vpack.c.bf16 %v221, %v220
      %v225 = vpack.c.bf16 %v223, %v222
      %v226 = vld [vmem:[%s209] sm:$0x1]
      %v228 = vperm.slane %v226, 0
      %vm230 = vcmask 261120
      %v232 = vsel %vm230, %v219, 0
      %234 = vmatpush.bf16.msra.mxu0 0
      %235 = vmatpush.bf16.msra.mxu0 0
      %236 = vmatpush.bf16.msra.mxu0 0
      %237 = vmatpush.bf16.msra.mxu0 0
      %238 = vmatpush.bf16.msra.mxu0 0
      %239 = vmatpush.bf16.msra.mxu0 0
      %240 = vmatpush.bf16.msra.mxu0 %v225
      %241 = vmatpush.bf16.msra.mxu0 %v224
      %242 = vmatmul.bf16.gmra.mxu0 %v232
      %v243 = vpop.f32.mrf.mxu0
      %v244 = vadd.f32 %v228, %v243
      %v245 = vpop.f32.mrf.mxu0
      %246 = vdwg.mxu0
      %247 = vst.msk [vmem:[%s216] sm:$0xff] %vm230, %v244
      %p248 = scmp.lt.s32.totalorder %s18, 1
      %s249 = scalar_select %p248, %s18, 1
      %p250 = scmp.lt.s32.totalorder %s19, 0
      %s251 = scalar_select %p250, %s19, 0
      %s252 = sadd.s32 %s251, %s249
      %s253 = smul.addr %s252, 8
      %s254 = scalar_lea.vmem %s3, %s253
      // Predicated region
      $region33: #{_attention_layer.4} parent=31 // pred_check
        %p255 = pneg %p124
      $region34: #{_attention_layer.4} parent=31 // pred_check_branch
        %257 = sbr.rel (%p255) target = $region36
      $region35: #{_attention_layer.4} parent=31 // pred_region
        _
      $region36: #{_attention_layer.4} parent=31 // pred_fallthru
        _
    $region32: #{_attention_layer.4} parent=5 // pred_fallthru
      _
    %p258 = scmp.le.s32.totalorder 2, %s9
    // Predicated region
    $region37: #{_attention_layer.4} parent=5 // pred_check
      %p259 = pneg %p258
    $region38: #{_attention_layer.4} parent=5 // pred_check_branch
      %261 = sbr.rel (%p259) target = $region40
    $region39: #{_attention_layer.4} parent=5 // pred_region
      %s262 = ssub.s32 %s9, 2
      // Predicated region
      $region41: #{_attention_layer.4} parent=39 // pred_check
        %p263 = pneg %p130
      $region42: #{_attention_layer.4} parent=39 // pred_check_branch
        %265 = sbr.rel (%p263) target = $region44
      $region43: #{_attention_layer.4} parent=39 // pred_region
        %p266 = scmp.lt.s32.totalorder %s20, 1
        %s267 = scalar_select %p266, %s20, 1
        %p268 = scmp.lt.s32.totalorder %s21, 0
        %s269 = scalar_select %p268, %s21, 0
        %s270 = sadd.s32 %s269, %s267
        %s271 = smul.addr %s270, 8
        %s272 = scalar_lea.vmem %s3, %s271
      $region44: #{_attention_layer.4} parent=39 // pred_fallthru
        _
    $region40: #{_attention_layer.4} parent=5 // pred_fallthru
      _
  $region6: #{_attention_layer.4} parent=0 // loop_footer
    %s13 = sadd.s32 1, %s9
  $region7: #{_attention_layer.4} parent=0 // loop_footer_branch
    %8 = sbr.rel target = $region3
  $region8: #{_attention_layer.4} parent=0 // loop_exit
    _

// kernel: _attention_layer.7
$region0: #{_attention_layer.7}
  #allocation0 [shape = 'u32[]', space=smem, size = 0x4, offset = 0x4, fixed_abs, tag = 'smem constant byte address 0x4 - core index']
  #allocation1 [shape = 'u32[72,128]{1,0:T(1,128)}', space=vmem, size = 0x9000, scoped, tag = 'internal scratch']
  #allocation2 [shape = 'f32[8,1]{1,0:T(8,128)}', space=vmem, size = 0x1000, scoped, tag = 'scratch operand']
  #allocation3 [shape = 'f32[8,1]{1,0:T(8,128)}', space=vmem, size = 0x1000, scoped, tag = 'scratch operand']
  #allocation4 [shape = 'f32[8,8]{1,0:T(8,128)}', space=vmem, size = 0x1000, scoped, tag = 'scratch operand']
  #allocation5 [shape = 'f32[8,32]{1,0:T(8,128)}', space=vmem, size = 0x1000, scoped, tag = 'scratch operand']
  %s0 = inlined_call_operand.vmem [shape: f32[2,4,8,8], index: 0, kind: input, shape index: {}]
  %s1 = inlined_call_operand.vmem [shape: f32[2,4,8,8], index: 1, kind: input, shape index: {}]
  %s2 = inlined_call_operand.vmem [shape: f32[2,4,8,8], index: 2, kind: input, shape index: {}]
  %s3 = inlined_call_operand.vmem [shape: f32[4,8,32], index: 3, kind: input, shape index: {}]
  %s4 = inlined_call_operand.vmem [shape: f32[1,32], index: 4, kind: input, shape index: {}]
  %s5 = inlined_call_operand.hbm [shape: f32[2,8,32], index: 5, kind: output, shape index: {}]
  %s6 = sld [smem:[#allocation0]]
  $region69: #{_attention_layer.7} parent=0
    _
  %s8 = ssub.s32 1, %s6
  %s9 = scalar_select 0, %s8, %s6
  $region1: #{_attention_layer.7} parent=0
    #allocation6 [shape = 'u8[8192]{0}', space=vmem, size = 0x2000, scoped, tag = 'output window, operand 0']
    #allocation7 [shape = 's32[2]{0}', space=sflag, size = 0x8, scoped, tag = 'scoped memory for _attention_layer.7']
    %10 = vsyncpa [#allocation7], 0
    %s11 = scalar_lea.sflag [#allocation7], 1
    %12 = vsyncpa %s11, 0
    loop: start=0, step=1, limit=10
    $region2: #{_attention_layer.7} parent=1 // loop_pre_header
      _
    $region3: #{_attention_layer.7} parent=1 // loop_header
      %s14 = sphi 0, %s18
      %p15 = scmp.ge.s32.totalorder %s14, 10
      %s21 = sphi 0, %s47
      %s22 = sphi 0, %s43
      %s23 = sphi 0, %s39
      %s24 = sphi 0, %s35
      %s25 = sphi 0, %s21
      %s26 = sphi 0, %s22
      %s27 = sphi 0, %s23
      %s28 = sphi 0, %s24
      %s29 = sphi 0, %s25
      %s30 = sphi 0, %s26
      %s31 = sphi 0, %s27
      %s32 = sphi 0, %s28
      %s54 = sphi 0, %s56
      %s57 = sphi 0, %s54
      %s58 = sphi 0, %s57
      %s74 = sphi 0, %s58
      %s84 = sphi 0, %s86
      %s87 = sphi 0, %s84
      %s88 = sphi 0, %s87
      %s104 = sphi 0, %s88
      %s114 = sphi 0, %s116
      %s117 = sphi 0, %s114
      %s118 = sphi 0, %s117
      %s134 = sphi 0, %s118
      %s140 = sphi 0, %s142
      %s143 = sphi 0, %s140
      %s144 = sphi 0, %s143
      %s160 = sphi 0, %s144
      %s164 = sphi 0, %s164
      %s166 = sphi 0, %s164
      %s167 = sphi 0, %s166
      %s181 = sphi 0, %s167
      %s189 = sphi 0, %s191
      %s192 = sphi 0, %s189
      %s193 = sphi 0, %s192
      %s209 = sphi 0, %s193
    $region4: #{_attention_layer.7} parent=1 // loop_header_branch
      %17 = sbr.rel (%p15) target = $region8
    $region5: #{_attention_layer.7} parent=1 // loop_body
      %s19 = ssub.s32 %s14, 1
      %s20 = ssub.s32 %s14, 2
      %s33 = sadd.s32 1, %s24
      %p34 = scmp.ge.s32.totalorder %s33, 1
      %s35 = scalar_select %p34, 0, %s33
      %s36 = sadd.s32 1, %s23
      %s37 = scalar_select %p34, %s36, %s23
      %p38 = scmp.ge.s32.totalorder %s37, 4
      %s39 = scalar_select %p38, 0, %s37
      %s40 = sadd.s32 1, %s22
      %s41 = scalar_select %p38, %s40, %s22
      %p42 = scmp.ge.s32.totalorder %s41, 1
      %s43 = scalar_select %p42, 0, %s41
      %s44 = sadd.s32 1, %s21
      %s45 = scalar_select %p42, %s44, %s21
      %p46 = scmp.ge.s32.totalorder %s45, 2
      %s47 = scalar_select %p46, 0, %s45
      %s48 = ssub.s32 %s21, %s47
      %s49 = ssub.s32 %s23, %s39
      %s50 = sor.u32 %s48, %s49
      %s51 = ssub.s32 %s22, %s43
      %s52 = sor.u32 %s50, %s51
      %p53 = scmp.eq.s32.totalorder %s52, 0
      %s55 = sadd.s32 %s54, 1
      %s56 = scalar_select %p53, %s54, %s55
      %p59 = pneg %p53
      %p60 = scmp.eq.s32.totalorder %s14, 7
      %p61 = por %p59, %p60
      %p62 = scmp.ne.s32.totalorder %s54, %s57
      %p63 = scmp.eq.s32.totalorder %s14, 0
      %p64 = por %p62, %p63
      %p65 = scmp.ne.s32.totalorder %s54, %s57
      %p66 = scmp.eq.s32.totalorder %s19, 7
      %p67 = por %p65, %p66
      %p68 = scmp.ne.s32.totalorder %s57, %s58
      %p69 = scmp.eq.s32.totalorder %s19, 0
      %p70 = por %p68, %p69
      %p71 = scmp.ne.s32.totalorder %s57, %s58
      %p72 = scmp.eq.s32.totalorder %s20, 7
      %p73 = por %p71, %p72
      %p75 = scmp.ne.s32.totalorder %s58, %s74
      %p76 = scmp.eq.s32.totalorder %s20, 0
      %p77 = por %p75, %p76
      %s78 = ssub.s32 %s21, %s47
      %s79 = ssub.s32 %s23, %s39
      %s80 = sor.u32 %s78, %s79
      %s81 = ssub.s32 %s24, %s35
      %s82 = sor.u32 %s80, %s81
      %p83 = scmp.eq.s32.totalorder %s82, 0
      %s85 = sadd.s32 %s84, 1
      %s86 = scalar_select %p83, %s84, %s85
      %p89 = pneg %p83
      %p90 = scmp.eq.s32.totalorder %s14, 7
      %p91 = por %p89, %p90
      %p92 = scmp.ne.s32.totalorder %s84, %s87
      %p93 = scmp.eq.s32.totalorder %s14, 0
      %p94 = por %p92, %p93
      %p95 = scmp.ne.s32.totalorder %s84, %s87
      %p96 = scmp.eq.s32.totalorder %s19, 7
      %p97 = por %p95, %p96
      %p98 = scmp.ne.s32.totalorder %s87, %s88
      %p99 = scmp.eq.s32.totalorder %s19, 0
      %p100 = por %p98, %p99
      %p101 = scmp.ne.s32.totalorder %s87, %s88
      %p102 = scmp.eq.s32.totalorder %s20, 7
      %p103 = por %p101, %p102
      %p105 = scmp.ne.s32.totalorder %s88, %s104
      %p106 = scmp.eq.s32.totalorder %s20, 0
      %p107 = por %p105, %p106
      %s108 = ssub.s32 %s21, %s47
      %s109 = ssub.s32 %s23, %s39
      %s110 = sor.u32 %s108, %s109
      %s111 = ssub.s32 %s24, %s35
      %s112 = sor.u32 %s110, %s111
      %p113 = scmp.eq.s32.totalorder %s112, 0
      %s115 = sadd.s32 %s114, 1
      %s116 = scalar_select %p113, %s114, %s115
      %p119 = pneg %p113
      %p120 = scmp.eq.s32.totalorder %s14, 7
      %p121 = por %p119, %p120
      %p122 = scmp.ne.s32.totalorder %s114, %s117
      %p123 = scmp.eq.s32.totalorder %s14, 0
      %p124 = por %p122, %p123
      %p125 = scmp.ne.s32.totalorder %s114, %s117
      %p126 = scmp.eq.s32.totalorder %s19, 7
      %p127 = por %p125, %p126
      %p128 = scmp.ne.s32.totalorder %s117, %s118
      %p129 = scmp.eq.s32.totalorder %s19, 0
      %p130 = por %p128, %p129
      %p131 = scmp.ne.s32.totalorder %s117, %s118
      %p132 = scmp.eq.s32.totalorder %s20, 7
      %p133 = por %p131, %p132
      %p135 = scmp.ne.s32.totalorder %s118, %s134
      %p136 = scmp.eq.s32.totalorder %s20, 0
      %p137 = por %p135, %p136
      %s138 = ssub.s32 %s23, %s39
      %p139 = scmp.eq.s32.totalorder %s138, 0
      %s141 = sadd.s32 %s140, 1
      %s142 = scalar_select %p139, %s140, %s141
      %p145 = pneg %p139
      %p146 = scmp.eq.s32.totalorder %s14, 7
      %p147 = por %p145, %p146
      %p148 = scmp.ne.s32.totalorder %s140, %s143
      %p149 = scmp.eq.s32.totalorder %s14, 0
      %p150 = por %p148, %p149
      %p151 = scmp.ne.s32.totalorder %s140, %s143
      %p152 = scmp.eq.s32.totalorder %s19, 7
      %p153 = por %p151, %p152
      %p154 = scmp.ne.s32.totalorder %s143, %s144
      %p155 = scmp.eq.s32.totalorder %s19, 0
      %p156 = por %p154, %p155
      %p157 = scmp.ne.s32.totalorder %s143, %s144
      %p158 = scmp.eq.s32.totalorder %s20, 7
      %p159 = por %p157, %p158
      %p161 = scmp.ne.s32.totalorder %s144, %s160
      %p162 = scmp.eq.s32.totalorder %s20, 0
      %p163 = por %p161, %p162
      %s165 = sadd.s32 %s164, 1
      %p168 = scmp.eq.s32.totalorder %s14, 7
      %p169 = scmp.ne.s32.totalorder %s164, %s166
      %p170 = scmp.eq.s32.totalorder %s14, 0
      %p171 = por %p169, %p170
      %p172 = scmp.ne.s32.totalorder %s164, %s166
      %p173 = scmp.eq.s32.totalorder %s19, 7
      %p174 = por %p172, %p173
      %p175 = scmp.ne.s32.totalorder %s166, %s167
      %p176 = scmp.eq.s32.totalorder %s19, 0
      %p177 = por %p175, %p176
      %p178 = scmp.ne.s32.totalorder %s166, %s167
      %p179 = scmp.eq.s32.totalorder %s20, 7
      %p180 = por %p178, %p179
      %p182 = scmp.ne.s32.totalorder %s167, %s181
      %p183 = scmp.eq.s32.totalorder %s20, 0
      %p184 = por %p182, %p183
      %s185 = ssub.s32 %s21, %s47
      %s186 = ssub.s32 %s22, %s43
      %s187 = sor.u32 %s185, %s186
      %p188 = scmp.eq.s32.totalorder %s187, 0
      %s190 = sadd.s32 %s189, 1
      %s191 = scalar_select %p188, %s189, %s190
      %p194 = pneg %p188
      %p195 = scmp.eq.s32.totalorder %s14, 7
      %p196 = por %p194, %p195
      %p197 = scmp.ne.s32.totalorder %s189, %s192
      %p198 = scmp.eq.s32.totalorder %s14, 0
      %p199 = por %p197, %p198
      %p200 = scmp.ne.s32.totalorder %s189, %s192
      %p201 = scmp.eq.s32.totalorder %s19, 7
      %p202 = por %p200, %p201
      %p203 = scmp.ne.s32.totalorder %s192, %s193
      %p204 = scmp.eq.s32.totalorder %s19, 0
      %p205 = por %p203, %p204
      %p206 = scmp.ne.s32.totalorder %s192, %s193
      %p207 = scmp.eq.s32.totalorder %s20, 7
      %p208 = por %p206, %p207
      %p210 = scmp.ne.s32.totalorder %s193, %s209
      %p211 = scmp.eq.s32.totalorder %s20, 0
      %p212 = por %p210, %p211
      %p213 = scmp.le.s32.totalorder 1, %s14
      %p214 = scmp.lt.s32.totalorder %s14, 9
      %p215 = pnand %p213, %p214
      %p216 = pneg %p215
      // Predicated region
      $region9: #{_attention_layer.7} parent=5 // pred_check
        _
      $region10: #{_attention_layer.7} parent=5 // pred_check_branch
        %218 = sbr.rel (%p215) target = $region12
      $region11: #{_attention_layer.7} parent=5 // pred_region
        %s219 = ssub.s32 %s14, 1
        // Predicated region
        $region13: #{_attention_layer.7} parent=11 // pred_check
          %p220 = pneg %p177
        $region14: #{_attention_layer.7} parent=11 // pred_check_branch
          %222 = sbr.rel (%p220) target = $region16
        $region15: #{_attention_layer.7} parent=11 // pred_region
          _
        $region16: #{_attention_layer.7} parent=11 // pred_fallthru
          _
      $region12: #{_attention_layer.7} parent=5 // pred_fallthru
        _
      %p223 = scmp.lt.s32.totalorder %s14, 8
      // Predicated region
      $region17: #{_attention_layer.7} parent=5 // pred_check
        %p224 = pneg %p223
      $region18: #{_attention_layer.7} parent=5 // pred_check_branch
        %226 = sbr.rel (%p224) target = $region20
      $region19: #{_attention_layer.7} parent=5 // pred_region
        // Predicated region
        $region21: #{_attention_layer.7} parent=19 // pred_check
          %p227 = pneg %p64
        $region22: #{_attention_layer.7} parent=19 // pred_check_branch
          %229 = sbr.rel (%p227) target = $region24
        $region23: #{_attention_layer.7} parent=19 // pred_region
          %p230 = scmp.lt.s32.totalorder %s21, 1
          %s231 = scalar_select %p230, %s21, 1
          %p232 = scmp.lt.s32.totalorder %s23, 3
          %s233 = scalar_select %p232, %s23, 3
          %p234 = scmp.lt.s32.totalorder %s22, 0
          %s235 = scalar_select %p234, %s22, 0
          %s236 = sadd.s32 %s235, %s233
          %s237 = smul.addr %s231, 4
          %s238 = sadd.s32 %s236, %s237
          %s239 = smul.addr %s238, 8
          %s240 = scalar_lea.vmem %s0, %s239
        $region24: #{_attention_layer.7} parent=19 // pred_fallthru
          _
        // Predicated region
        $region25: #{_attention_layer.7} parent=19 // pred_check
          %p241 = pneg %p94
        $region26: #{_attention_layer.7} parent=19 // pred_check_branch
          %243 = sbr.rel (%p241) target = $region28
        $region27: #{_attention_layer.7} parent=19 // pred_region
          %p244 = scmp.lt.s32.totalorder %s21, 1
          %s245 = scalar_select %p244, %s21, 1
          %p246 = scmp.lt.s32.totalorder %s23, 3
          %s247 = scalar_select %p246, %s23, 3
          %p248 = scmp.lt.s32.totalorder %s24, 0
          %s249 = scalar_select %p248, %s24, 0
          %s250 = sadd.s32 %s249, %s247
          %s251 = smul.addr %s245, 4
          %s252 = sadd.s32 %s250, %s251
          %s253 = smul.addr %s252, 8
          %s254 = scalar_lea.vmem %s1, %s253
        $region28: #{_attention_layer.7} parent=19 // pred_fallthru
          _
        // Predicated region
        $region29: #{_attention_layer.7} parent=19 // pred_check
          %p255 = pneg %p124
        $region30: #{_attention_layer.7} parent=19 // pred_check_branch
          %257 = sbr.rel (%p255) target = $region32
        $region31: #{_attention_layer.7} parent=19 // pred_region
          %p258 = scmp.lt.s32.totalorder %s21, 1
          %s259 = scalar_select %p258, %s21, 1
          %p260 = scmp.lt.s32.totalorder %s23, 3
          %s261 = scalar_select %p260, %s23, 3
          %p262 = scmp.lt.s32.totalorder %s24, 0
          %s263 = scalar_select %p262, %s24, 0
          %s264 = sadd.s32 %s263, %s261
          %s265 = smul.addr %s259, 4
          %s266 = sadd.s32 %s264, %s265
          %s267 = smul.addr %s266, 8
          %s268 = scalar_lea.vmem %s2, %s267
        $region32: #{_attention_layer.7} parent=19 // pred_fallthru
          _
        // Predicated region
        $region33: #{_attention_layer.7} parent=19 // pred_check
          %p269 = pneg %p150
        $region34: #{_attention_layer.7} parent=19 // pred_check_branch
          %271 = sbr.rel (%p269) target = $region36
        $region35: #{_attention_layer.7} parent=19 // pred_region
          %p272 = scmp.lt.s32.totalorder %s23, 3
          %s273 = scalar_select %p272, %s23, 3
          %s274 = smul.addr %s273, 8
          %s275 = scalar_lea.vmem %s3, %s274
        $region36: #{_attention_layer.7} parent=19 // pred_fallthru
          _
      $region20: #{_attention_layer.7} parent=5 // pred_fallthru
        _
      %p276 = scmp.le.s32.totalorder 1, %s14
      %p277 = scmp.lt.s32.totalorder %s14, 9
      %p278 = pnand %p276, %p277
      %p279 = pneg %p278
      // Predicated region
      $region37: #{_attention_layer.7} parent=5 // pred_check
        _
      $region38: #{_attention_layer.7} parent=5 // pred_check_branch
        %281 = sbr.rel (%p278) target = $region40
      $region39: #{_attention_layer.7} parent=5 // pred_region
        %s282 = ssub.s32 %s14, 1
        %p283 = scmp.lt.s32.totalorder %s25, 1
        %s284 = scalar_select %p283, %s25, 1
        %p285 = scmp.lt.s32.totalorder %s27, 3
        %s286 = scalar_select %p285, %s27, 3
        %p287 = scmp.lt.s32.totalorder %s26, 0
        %s288 = scalar_select %p287, %s26, 0
        %s289 = sadd.s32 %s288, %s286
        %s290 = smul.addr %s284, 4
        %s291 = sadd.s32 %s289, %s290
        %s292 = smul.addr %s291, 8
        %s293 = scalar_lea.vmem %s0, %s292
        %p294 = pneg %p70
        %p295 = pneg %p67
        %p296 = scmp.lt.s32.totalorder %s25, 1
        %s297 = scalar_select %p296, %s25, 1
        %p298 = scmp.lt.s32.totalorder %s27, 3
        %s299 = scalar_select %p298, %s27, 3
        %p300 = scmp.lt.s32.totalorder %s28, 0
        %s301 = scalar_select %p300, %s28, 0
        %s302 = sadd.s32 %s301, %s299
        %s303 = smul.addr %s297, 4
        %s304 = sadd.s32 %s302, %s303
        %s305 = smul.addr %s304, 8
        %s306 = scalar_lea.vmem %s1, %s305
        %p307 = pneg %p100
        %p308 = pneg %p97
        %p309 = scmp.lt.s32.totalorder %s25, 1
        %s310 = scalar_select %p309, %s25, 1
        %p311 = scmp.lt.s32.totalorder %s27, 3
        %s312 = scalar_select %p311, %s27, 3
        %p313 = scmp.lt.s32.totalorder %s28, 0
        %s314 = scalar_select %p313, %s28, 0
        %s315 = sadd.s32 %s314, %s312
        %s316 = smul.addr %s310, 4
        %s317 = sadd.s32 %s315, %s316
        %s318 = smul.addr %s317, 8
        %s319 = scalar_lea.vmem %s2, %s318
        %p320 = pneg %p130
        %p321 = pneg %p127
        %p322 = scmp.lt.s32.totalorder %s27, 3
        %s323 = scalar_select %p322, %s27, 3
        %s324 = smul.addr %s323, 8
        %s325 = scalar_lea.vmem %s3, %s324
        %p326 = pneg %p156
        %p327 = pneg %p153
        %p328 = pneg %p177
        %p329 = pneg %p174
        %p330 = pneg %p205
        %p331 = pneg %p202
        %s332 = sand.u32 %s192, 1
        %s333 = scalar_lea.sflag [#allocation7], %s332
        %s334 = sand.u32 %s192, 1
        %s335 = smul.addr %s334, 8
        %s336 = scalar_lea.vmem [#allocation6], %s335
        %p337 = scmp.lt.s32.totalorder %s25, 1
        %s338 = scalar_select %p337, %s25, 1
        %p339 = scmp.lt.s32.totalorder %s27, 3
        %s340 = scalar_select %p339, %s27, 3
        %p341 = scmp.lt.s32.totalorder %s26, 0
        %s342 = scalar_select %p341, %s26, 0
        %s343 = sadd.s32 %s342, %s340
        %s344 = smul.addr %s338, 4
        %s345 = sadd.s32 %s343, %s344
        %s346 = smul.addr %s345, 8
        %s347 = scalar_lea.vmem %s0, %s346
        %p348 = scmp.lt.s32.totalorder %s25, 1
        %s349 = scalar_select %p348, %s25, 1
        %p350 = scmp.lt.s32.totalorder %s27, 3
        %s351 = scalar_select %p350, %s27, 3
        %p352 = scmp.lt.s32.totalorder %s28, 0
        %s353 = scalar_select %p352, %s28, 0
        %s354 = sadd.s32 %s353, %s351
        %s355 = smul.addr %s349, 4
        %s356 = sadd.s32 %s354, %s355
        %s357 = smul.addr %s356, 8
        %s358 = scalar_lea.vmem %s1, %s357
        %p359 = scmp.lt.s32.totalorder %s25, 1
        %s360 = scalar_select %p359, %s25, 1
        %p361 = scmp.lt.s32.totalorder %s27, 3
        %s362 = scalar_select %p361, %s27, 3
        %p363 = scmp.lt.s32.totalorder %s28, 0
        %s364 = scalar_select %p363, %s28, 0
        %s365 = sadd.s32 %s364, %s362
        %s366 = smul.addr %s360, 4
        %s367 = sadd.s32 %s365, %s366
        %s368 = smul.addr %s367, 8
        %s369 = scalar_lea.vmem %s2, %s368
        %p370 = scmp.lt.s32.totalorder %s27, 3
        %s371 = scalar_select %p370, %s27, 3
        %s372 = smul.addr %s371, 8
        %s373 = scalar_lea.vmem %s3, %s372
        %p375 = scmp.eq.s32.totalorder %s27, 0
        %p376 = scmp.eq.s32.totalorder %s28, 0
        %p377 = pnand %p375, %p376
        %p378 = pneg %p377
        // Predicated region
        $region41: #{_attention_layer.7} parent=39 // pred_check
          _
        $region42: #{_attention_layer.7} parent=39 // pred_check_branch
          %380 = sbr.rel (%p377) target = $region44
        $region43: #{_attention_layer.7} parent=39 // pred_region
          %vm381 = vcmask 261120
          %382 = vst.msk [vmem:[#allocation5] sm:$0xff] %vm381, 0.0
        $region44: #{_attention_layer.7} parent=39 // pred_fallthru
          _
        // Predicated region
        $region45: #{_attention_layer.7} parent=39 // pred_check
          %p383 = pneg %p376
        $region46: #{_attention_layer.7} parent=39 // pred_check_branch
          %385 = sbr.rel (%p383) target = $region48
        $region47: #{_attention_layer.7} parent=39 // pred_region
          %vm386 = vcmask 7168
          %387 = vst.msk [vmem:[#allocation2] sm:$0xff] %vm386, -inf
          %388 = vst.msk [vmem:[#allocation3] sm:$0xff] %vm386, 0.0
          %vm389 = vcmask 64512
          %390 = vst.msk [vmem:[#allocation4] sm:$0xff] %vm389, 0.0
        $region48: #{_attention_layer.7} parent=39 // pred_fallthru
          _
        %v391 = vld [vmem:[%s347] sm:$0xff]
        %v392 = vpack.c.bf16 %v391, %v391
        %v393 = vld [vmem:[%s358] sm:$0xff]
        %v394 = vpack.c.bf16 %v393, %v393
        %v395 = vld [vmem:[%s369] sm:$0xff]
        %vm396 = vcmask 64512
        %v398 = vsel %vm396, %v392, 0
        %v401 = vsel %vm396, %v394, 0
        %403 = vmatpush.bf16.xpose.msra.mxu0 0
        %404 = vmatpush.bf16.xpose.msra.mxu0 0
        %405 = vmatpush.bf16.xpose.msra.mxu0 0
        %406 = vmatpush.bf16.xpose.msra.mxu0 0
        %407 = vmatpush.bf16.xpose.msra.mxu0 0
        %408 = vmatpush.bf16.xpose.msra.mxu0 0
        %409 = vmatpush.bf16.xpose.msra.mxu0 0
        %410 = vmatpush.bf16.xpose.msra.mxu0 %v401
        %411 = vmatmul.bf16.gmra.mxu0 %v398
        %v412 = vpop.f32.mrf.mxu0
        %v413 = vadd.f32 0.0, %v412
        %v414 = vpop.f32.mrf.mxu0
        %415 = vdwg.mxu0
        %v416 = vld [vmem:[#allocation2] sm:$0xff]
        %v417 = vsel %vm396, %v413, -inf
        %418 = vmax.xlane.f32.xlu0 %v417
        %v419 = vpop.xlane.xlu0 %418
        %v420 = vmax.f32 %v416, %v419
        %v421 = vsub.f32 %v416, %v420
        %v422 = vmul.f32 %v421, 1.442695
        %v423 = vpow.pop %v422
        %425 = vset.pattern.permute.xlu0 0
        %426 = vperm.xlu0 %425, %v420
        %v427 = vpop.permute.xlu0 %426
        %v429 = vsub.f32 %v413, %v427
        %v430 = vmul.f32 %v429, 1.442695
        %v431 = vpow.pop %v430
        %v432 = vld [vmem:[#allocation3] sm:$0xff]
        %v433 = vmul.f32 %v423, %v432
        %v434 = vsel %vm396, %v431, 0.0
        %435 = vadd.xlane.f32.xlu0 %v434
        %v436 = vpop.xlane.xlu0 %435
        %v437 = vadd.f32 %v433, %v436
        %vm438 = vcmask 7168
        %439 = vst.msk [vmem:[#allocation3] sm:$0xff] %vm438, %v437
        %v440 = vld [vmem:[#allocation4] sm:$0xff]
        %442 = vset.pattern.permute.xlu0 0
        %443 = vperm.xlu0 %442, %v423
        %v444 = vpop.permute.xlu0 %443
        %v446 = vmul.f32 %v444, %v440
        %v447 = vpack.c.bf16 %v431, %v431
        %v448 = vpack.c.bf16 %v395, %v395
        %v450 = vsel %vm396, %v447, 0
        %vm452 = vcmask 1043456
        %v454 = vsel %vm452, %v448, 0
        %456 = vmatpush.bf16.msra.mxu0 0
        %457 = vmatpush.bf16.msra.mxu0 0
        %458 = vmatpush.bf16.msra.mxu0 0
        %459 = vmatpush.bf16.msra.mxu0 0
        %460 = vmatpush.bf16.msra.mxu0 0
        %461 = vmatpush.bf16.msra.mxu0 0
        %462 = vmatpush.bf16.msra.mxu0 0
        %463 = vmatpush.bf16.msra.mxu0 %v454
        %464 = vmatmul.bf16.gmra.mxu0 %v450
        %v465 = vpop.f32.mrf.mxu0
        %v466 = vadd.f32 0.0, %v465
        %v467 = vpop.f32.mrf.mxu0
        %468 = vdwg.mxu0
        %v469 = vadd.f32 %v446, %v466
        %470 = vst.msk [vmem:[#allocation4] sm:$0xff] %vm396, %v469
        %471 = vst.msk [vmem:[#allocation2] sm:$0xff] %vm438, %v420
        // Predicated region
        $region49: #{_attention_layer.7} parent=39 // pred_check
          %p472 = pneg %p376
        $region50: #{_attention_layer.7} parent=39 // pred_check_branch
          %474 = sbr.rel (%p472) target = $region52
        $region51: #{_attention_layer.7} parent=39 // pred_region
          %v475 = vld [vmem:[#allocation4] sm:$0xff]
          %v476 = vld [vmem:[#allocation3] sm:$0xff]
          %v477 = vrcp.pop %v476
          %479 = vset.pattern.permute.xlu0 0
          %480 = vperm.xlu0 %479, %v477
          %v481 = vpop.permute.xlu0 %480
          %v483 = vmul.f32 %v475, %v481
          %v484 = vld [vmem:[#allocation5] sm:$0xff]
          %v485 = vpack.c.bf16 %v483, %v483
          %v486 = vld [vmem:[%s373] sm:$0xff]
          %v487 = vpack.c.bf16 %v486, %v486
          %v489 = vsel %vm396, %v485, 0
          %v492 = vsel %vm452, %v487, 0
          %494 = vmatpush.bf16.msra.mxu0 0
          %495 = vmatpush.bf16.msra.mxu0 0
          %496 = vmatpush.bf16.msra.mxu0 0
          %497 = vmatpush.bf16.msra.mxu0 0
          %498 = vmatpush.bf16.msra.mxu0 0
          %499 = vmatpush.bf16.msra.mxu0 0
          %500 = vmatpush.bf16.msra.mxu0 0
          %501 = vmatpush.bf16.msra.mxu0 %v492
          %502 = vmatmul.bf16.gmra.mxu0 %v489
          %v503 = vpop.f32.mrf.mxu0
          %v504 = vadd.f32 0.0, %v503
          %v505 = vpop.f32.mrf.mxu0
          %506 = vdwg.mxu0
          %v507 = vadd.f32 %v484, %v504
          %vm508 = vcmask 261120
          %509 = vst.msk [vmem:[#allocation5] sm:$0xff] %vm508, %v507
        $region52: #{_attention_layer.7} parent=39 // pred_fallthru
          _
        %p510 = scmp.eq.s32.totalorder %s27, 3
        %p511 = pnand %p510, %p376
        %p512 = pneg %p511
        // Predicated region
        $region53: #{_attention_layer.7} parent=39 // pred_check
          _
        $region54: #{_attention_layer.7} parent=39 // pred_check_branch
          %514 = sbr.rel (%p511) target = $region56
        $region55: #{_attention_layer.7} parent=39 // pred_region
          %v515 = vld [vmem:[#allocation5] sm:$0xff]
          %v516 = vld [vmem:[%s4] sm:$0x1]
          %v518 = vperm.slane %v516, 0
          %v520 = vadd.f32 %v515, %v518
          %vm521 = vcmask 261120
          %522 = vst.msk [vmem:[%s336] sm:$0xff] %vm521, %v520
        $region56: #{_attention_layer.7} parent=39 // pred_fallthru
          _
        %s523 = sand.u32 %s192, 1
        %s524 = scalar_lea.sflag [#allocation7], %s523
        %s525 = sand.u32 %s192, 1
        %s526 = smul.addr %s525, 8
        %s527 = scalar_lea.vmem [#allocation6], %s526
        // Predicated region
        $region57: #{_attention_layer.7} parent=39 // pred_check
          %p528 = pneg %p202
        $region58: #{_attention_layer.7} parent=39 // pred_check_branch
          %530 = sbr.rel (%p528) target = $region60
        $region59: #{_attention_layer.7} parent=39 // pred_region
          %532 = vsyncadd %s524, 0
          %s533 = sadd.s32 %s26, %s25
          %s534 = smul.addr %s533, 8
          %s535 = scalar_lea.hbm %s5, %s534
          %s537 = sshll.u32 %s527, 4
          %s538 = int_to_ptr.vmem [resolvable:$true] %s537
          %s539 = sshll.u32 %s535, 4
          %s540 = int_to_ptr.hbm [resolvable:$true] %s539
          %542 = dma.vmem_to_hbm [thread:$0]  %s538, 128, %s540, %s524
        $region60: #{_attention_layer.7} parent=39 // pred_fallthru
          _
      $region40: #{_attention_layer.7} parent=5 // pred_fallthru
        _
      %p543 = scmp.le.s32.totalorder 2, %s14
      // Predicated region
      $region61: #{_attention_layer.7} parent=5 // pred_check
        %p544 = pneg %p543
      $region62: #{_attention_layer.7} parent=5 // pred_check_branch
        %546 = sbr.rel (%p544) target = $region64
      $region63: #{_attention_layer.7} parent=5 // pred_region
        %s547 = ssub.s32 %s14, 2
        // Predicated region
        $region65: #{_attention_layer.7} parent=63 // pred_check
          %p548 = pneg %p208
        $region66: #{_attention_layer.7} parent=63 // pred_check_branch
          %550 = sbr.rel (%p548) target = $region68
        $region67: #{_attention_layer.7} parent=63 // pred_region
          %s551 = sand.u32 %s193, 1
          %s552 = scalar_lea.sflag [#allocation7], %s551
          %s553 = sand.u32 %s193, 1
          %s554 = smul.addr %s553, 8
          %s555 = scalar_lea.vmem [#allocation6], %s554
          %557 = dma.done %s552, 128
        $region68: #{_attention_layer.7} parent=63 // pred_fallthru
          _
      $region64: #{_attention_layer.7} parent=5 // pred_fallthru
        _
    $region6: #{_attention_layer.7} parent=1 // loop_footer
      %s18 = sadd.s32 1, %s14
    $region7: #{_attention_layer.7} parent=1 // loop_footer_branch
      %13 = sbr.rel target = $region3
    $region8: #{_attention_layer.7} parent=1 // loop_exit
      _
    %558 = vsyncpa [#allocation7], 1
    %s559 = scalar_lea.sflag [#allocation7], 1
    %560 = vsyncpa %s559, 1

</llo_original>
